<compile_context>
chip_gen: v6e
topology: v6e:2x2x1
jax: 0.10.0
libtpu: 0.0.40
codegen_flags: <defaults>
</compile_context>

<pallas_src>
import functools

import jax
import jax.numpy as jnp
from jax.experimental import pallas as pl
from jax.experimental.pallas import tpu as pltpu

HIDDEN = 32
FEAT = 3
FEAT_PAD = 8  # pad 3 input features to 8 so the folded input is sublane-aligned


def _round_up(n, m):
    return ((n + m - 1) // m) * m


def _mlp_kernel(x_ref, w1_ref, b1_ref, w2_ref, b2_ref, w3_ref, b3_ref,
                w4_ref, b4_ref, o_ref, *, act_dtype, mxu_dtype):
    """Folded 4-layer MLP (F = fold factor, G = batch lanes per tile).

      x_ref : (F*FEAT_PAD, G)   features, fold groups stacked on sublanes
      wK_ref: block-diagonal weights (F copies of the layer on the diagonal), bf16
      bK_ref: (F*out, 1) f32 biases tiled over fold groups
      o_ref : (F, G) f32 folded output (one value per batch element)
    """
    act_dtype = jnp.dtype(act_dtype)
    mxu_dtype = jnp.dtype(mxu_dtype)

    def layer(w_ref, b_ref, h):
        # MXU matmul with bf16 operands, f32 accumulation; bias add in f32;
        # single downcast into act_dtype for tanh (bf16 EUP on v6e/v7x).
        z = jnp.dot(w_ref[...], h, preferred_element_type=jnp.float32) + b_ref[...]
        a = jnp.tanh(z.astype(act_dtype))
        return a if act_dtype == mxu_dtype else a.astype(mxu_dtype)

    h = layer(w1_ref, b1_ref, x_ref[...])            # (F*32, G)
    h = layer(w2_ref, b2_ref, h)                     # (F*32, G)
    h = layer(w3_ref, b3_ref, h)                     # (F*32, G)
    out = jnp.dot(w4_ref[...], h, preferred_element_type=jnp.float32) + b4_ref[...]
    o_ref[...] = out.astype(o_ref.dtype)             # (F, G) dense store


def device_defaults():
    """Pick fold factor / activation dtype from the TPU generation."""
    try:
        kind = jax.devices()[0].device_kind.lower()
    except Exception:
        kind = ""
    narrow_mxu = any(t in kind for t in ("v2", "v3", "v4", "v5"))
    fold = 4 if narrow_mxu else 8                 # 128x128 MXU -> 4, 256x256 -> 8
    act_dtype = jnp.float32 if narrow_mxu else jnp.bfloat16  # bf16 VPU/EUP on v6e+
    return fold, act_dtype


def prepare_params(params, *, fold=None, act_dtype=None, mxu_dtype=jnp.bfloat16):
    """One-time host-side prep: block-diagonal weights, tiled biases, bf16 cast."""
    dflt_fold, dflt_act = device_defaults()
    F = dflt_fold if fold is None else fold
    act_dtype = dflt_act if act_dtype is None else act_dtype
    eye = jnp.eye(F, dtype=jnp.float32)

    w1 = params["w1"].astype(jnp.float32)                                   # (32, 3)
    w1p = jnp.zeros((HIDDEN, FEAT_PAD), jnp.float32).at[:, :FEAT].set(w1)   # (32, 8)
    w1_bd = jnp.kron(eye, w1p)                                              # (F*32, F*8)
    w2_bd = jnp.kron(eye, params["w2"].astype(jnp.float32))                 # (F*32, F*32)
    w3_bd = jnp.kron(eye, params["w3"].astype(jnp.float32))                 # (F*32, F*32)
    w4_bd = jnp.kron(eye, params["w4"].reshape(1, HIDDEN).astype(jnp.float32))  # (F, F*32)

    def tile_bias(b, out_dim):
        return jnp.tile(b.reshape(out_dim, 1).astype(jnp.float32), (F, 1))

    return {
        "fold": F,
        "act_dtype": jnp.dtype(act_dtype),
        "mxu_dtype": jnp.dtype(mxu_dtype),
        "w1": w1_bd.astype(mxu_dtype), "b1": tile_bias(params["b1"], HIDDEN),
        "w2": w2_bd.astype(mxu_dtype), "b2": tile_bias(params["b2"], HIDDEN),
        "w3": w3_bd.astype(mxu_dtype), "b3": tile_bias(params["b3"], HIDDEN),
        "w4": w4_bd.astype(mxu_dtype), "b4": tile_bias(params["b4"], 1),
    }


def value_function_nn(x, prepped, *, tile_b=8192):
    """x: [B, 3] float32 -> [B, 1] float32, matching the PyTorch forward pass."""
    B = x.shape[0]
    F = prepped["fold"]
    mxu_dtype = prepped["mxu_dtype"]
    act_dtype = prepped["act_dtype"]

    unit = F * 128                                  # tile granularity (lane-dense fold)
    tb_cap = _round_up(tile_b, unit)
    # Big tiles amortize per-step overhead, but keep >=4 grid steps for large B so
    # the "parallel" grid axis load-balances both v7x TensorCores.
    tb = min(tb_cap, max(unit, _round_up(pl.cdiv(B, 4), unit)))
    Bp = _round_up(B, tb)
    C = Bp // F                                     # folded lane extent (whole array)
    G = tb // F                                     # folded lane extent per tile
    grid = (Bp // tb,)

    # Fold the batch once in the wrapper: x[b, k] -> x_folded[f*FEAT_PAD+k, c],
    # with b = f*C + c (padded features/rows are zero).
    x_pad = jnp.zeros((Bp, FEAT_PAD), jnp.float32).at[:B, :FEAT].set(
        x.astype(jnp.float32))
    x_folded = (x_pad.T.reshape(FEAT_PAD, F, C).transpose(1, 0, 2)
                .reshape(F * FEAT_PAD, C).astype(mxu_dtype))

    def const_spec(arr):
        # Full-array block, same block every step -> stays VMEM-resident.
        return pl.BlockSpec(arr.shape, lambda i: (0, 0))

    n_param = sum(int(prepped[k].size) for k in
                  ("w1", "b1", "w2", "b2", "w3", "b3", "w4", "b4"))
    cost = pl.CostEstimate(
        flops=2 * Bp * (FEAT * HIDDEN + 2 * HIDDEN * HIDDEN + HIDDEN),
        transcendentals=3 * HIDDEN * Bp,
        bytes_accessed=int(x_folded.size * x_folded.dtype.itemsize
                           + 4 * F * C + 2 * n_param),
    )

    out_folded = pl.pallas_call(
        functools.partial(_mlp_kernel, act_dtype=act_dtype, mxu_dtype=mxu_dtype),
        out_shape=jax.ShapeDtypeStruct((F, C), jnp.float32),
        grid=grid,
        in_specs=[
            pl.BlockSpec((F * FEAT_PAD, G), lambda i: (0, i)),   # folded x tile
            const_spec(prepped["w1"]), const_spec(prepped["b1"]),
            const_spec(prepped["w2"]), const_spec(prepped["b2"]),
            const_spec(prepped["w3"]), const_spec(prepped["b3"]),
            const_spec(prepped["w4"]), const_spec(prepped["b4"]),
        ],
        out_specs=pl.BlockSpec((F, G), lambda i: (0, i)),
        compiler_params=pltpu.CompilerParams(
            dimension_semantics=("parallel",),      # megacore-shard batch tiles (v7x)
            vmem_limit_bytes=32 * 1024 * 1024,
        ),
        cost_estimate=cost,
    )(x_folded, prepped["w1"], prepped["b1"], prepped["w2"], prepped["b2"],
      prepped["w3"], prepped["b3"], prepped["w4"], prepped["b4"])

    # Un-fold: (F, C) row-major flatten gives batch index b = f*C + c.
    return out_folded.reshape(Bp)[:B].reshape(B, 1)


def init_params(key):
    """PyTorch nn.Linear default init: U(-1/sqrt(fan_in), 1/sqrt(fan_in)).
    Weights stored in PyTorch (out_features, in_features) layout."""
    dims = [(3, 32), (32, 32), (32, 32), (32, 1)]
    params = {}
    for i, (fan_in, fan_out) in enumerate(dims, start=1):
        key, kw, kb = jax.random.split(key, 3)
        bound = 1.0 / (fan_in ** 0.5)
        params[f"w{i}"] = jax.random.uniform(
            kw, (fan_out, fan_in), jnp.float32, -bound, bound)
        params[f"b{i}"] = jax.random.uniform(
            kb, (fan_out,), jnp.float32, -bound, bound)
    return params


def reference_forward(x, params):
    h = jnp.tanh(x @ params["w1"].T + params["b1"])
    h = jnp.tanh(h @ params["w2"].T + params["b2"])
    h = jnp.tanh(h @ params["w3"].T + params["b3"])
    return h @ params["w4"].T + params["b4"]


if __name__ == "__main__":
    key = jax.random.PRNGKey(0)
    key, kx = jax.random.split(key)
    B = 8
    x = jax.random.normal(kx, (B, FEAT), jnp.float32)

    params = init_params(key)
    prepped = prepare_params(params)

    out = value_function_nn(x, prepped)
    out = jax.block_until_ready(out)

    ref = reference_forward(x, params)
    assert out.shape == (B, 1)
    err = float(jnp.max(jnp.abs(out - ref)))
    assert jnp.allclose(out, ref, atol=3e-2, rtol=3e-2), f"max abs err {err}"
    print("KERNEL_OK")
</pallas_src>

<mosaic_0001>
module attributes {stable_mosaic.version = 11 : i64} {
  func.func @_mlp_kernel(%arg0: i32, %arg1: memref<64x128xbf16, #tpu.memory_space<vmem>>, %arg2: memref<256x64xbf16, #tpu.memory_space<vmem>>, %arg3: memref<256x1xf32, #tpu.memory_space<vmem>>, %arg4: memref<256x256xbf16, #tpu.memory_space<vmem>>, %arg5: memref<256x1xf32, #tpu.memory_space<vmem>>, %arg6: memref<256x256xbf16, #tpu.memory_space<vmem>>, %arg7: memref<256x1xf32, #tpu.memory_space<vmem>>, %arg8: memref<8x256xbf16, #tpu.memory_space<vmem>>, %arg9: memref<8x1xf32, #tpu.memory_space<vmem>>, %arg10: memref<8x128xf32, #tpu.memory_space<vmem>>) attributes {dimension_semantics = [#tpu.dimension_semantics<parallel>], iteration_bounds = array<i64: 1>, scalar_prefetch = 0 : i64, scratch_operands = 0 : i64, tpu.core_type = #tpu.core_type<tc>, window_params = [{transform_indices = @transform_0, window_bounds = array<i64: 64, 128>}, {pipeline_mode = #tpu.pipeline_mode<synchronous>, transform_indices = @transform_1, window_bounds = array<i64: 256, 64>}, {pipeline_mode = #tpu.pipeline_mode<synchronous>, transform_indices = @transform_2, window_bounds = array<i64: 256, 1>}, {pipeline_mode = #tpu.pipeline_mode<synchronous>, transform_indices = @transform_3, window_bounds = array<i64: 256, 256>}, {pipeline_mode = #tpu.pipeline_mode<synchronous>, transform_indices = @transform_4, window_bounds = array<i64: 256, 1>}, {pipeline_mode = #tpu.pipeline_mode<synchronous>, transform_indices = @transform_5, window_bounds = array<i64: 256, 256>}, {pipeline_mode = #tpu.pipeline_mode<synchronous>, transform_indices = @transform_6, window_bounds = array<i64: 256, 1>}, {pipeline_mode = #tpu.pipeline_mode<synchronous>, transform_indices = @transform_7, window_bounds = array<i64: 8, 256>}, {pipeline_mode = #tpu.pipeline_mode<synchronous>, transform_indices = @transform_8, window_bounds = array<i64: 8, 1>}, {transform_indices = @transform_9, window_bounds = array<i64: 8, 128>}]} {
    %c0 = arith.constant 0 : index
    %c0_0 = arith.constant 0 : index
    %0 = vector.load %arg1[%c0, %c0_0] : memref<64x128xbf16, #tpu.memory_space<vmem>>, vector<64x128xbf16>
    %c0_1 = arith.constant 0 : index
    %c0_2 = arith.constant 0 : index
    %1 = vector.load %arg2[%c0_1, %c0_2] : memref<256x64xbf16, #tpu.memory_space<vmem>>, vector<256x64xbf16>
    %cst = arith.constant dense<0.000000e+00> : vector<256x128xf32>
    %2 = tpu.matmul %1, %0, %cst {dimension_numbers = #tpu.dot_dimension_numbers<[1], [0], [0], [1], [0, 0, 1, 1], [], []>} : vector<256x64xbf16>, vector<64x128xbf16>, vector<256x128xf32> -> vector<256x128xf32>
    %c0_3 = arith.constant 0 : index
    %c0_4 = arith.constant 0 : index
    %3 = vector.load %arg3[%c0_3, %c0_4] : memref<256x1xf32, #tpu.memory_space<vmem>>, vector<256x1xf32>
    %4 = vector.broadcast %3 : vector<256x1xf32> to vector<256x128xf32>
    %5 = arith.addf %2, %4 : vector<256x128xf32>
    %6 = arith.truncf %5 : vector<256x128xf32> to vector<256x128xbf16>
    %7 = math.tanh %6 : vector<256x128xbf16>
    %c0_5 = arith.constant 0 : index
    %c0_6 = arith.constant 0 : index
    %8 = vector.load %arg4[%c0_5, %c0_6] : memref<256x256xbf16, #tpu.memory_space<vmem>>, vector<256x256xbf16>
    %cst_7 = arith.constant dense<0.000000e+00> : vector<256x128xf32>
    %9 = tpu.matmul %8, %7, %cst_7 {dimension_numbers = #tpu.dot_dimension_numbers<[1], [0], [0], [1], [0, 0, 1, 1], [], []>} : vector<256x256xbf16>, vector<256x128xbf16>, vector<256x128xf32> -> vector<256x128xf32>
    %c0_8 = arith.constant 0 : index
    %c0_9 = arith.constant 0 : index
    %10 = vector.load %arg5[%c0_8, %c0_9] : memref<256x1xf32, #tpu.memory_space<vmem>>, vector<256x1xf32>
    %11 = vector.broadcast %10 : vector<256x1xf32> to vector<256x128xf32>
    %12 = arith.addf %9, %11 : vector<256x128xf32>
    %13 = arith.truncf %12 : vector<256x128xf32> to vector<256x128xbf16>
    %14 = math.tanh %13 : vector<256x128xbf16>
    %c0_10 = arith.constant 0 : index
    %c0_11 = arith.constant 0 : index
    %15 = vector.load %arg6[%c0_10, %c0_11] : memref<256x256xbf16, #tpu.memory_space<vmem>>, vector<256x256xbf16>
    %cst_12 = arith.constant dense<0.000000e+00> : vector<256x128xf32>
    %16 = tpu.matmul %15, %14, %cst_12 {dimension_numbers = #tpu.dot_dimension_numbers<[1], [0], [0], [1], [0, 0, 1, 1], [], []>} : vector<256x256xbf16>, vector<256x128xbf16>, vector<256x128xf32> -> vector<256x128xf32>
    %c0_13 = arith.constant 0 : index
    %c0_14 = arith.constant 0 : index
    %17 = vector.load %arg7[%c0_13, %c0_14] : memref<256x1xf32, #tpu.memory_space<vmem>>, vector<256x1xf32>
    %18 = vector.broadcast %17 : vector<256x1xf32> to vector<256x128xf32>
    %19 = arith.addf %16, %18 : vector<256x128xf32>
    %20 = arith.truncf %19 : vector<256x128xf32> to vector<256x128xbf16>
    %21 = math.tanh %20 : vector<256x128xbf16>
    %c0_15 = arith.constant 0 : index
    %c0_16 = arith.constant 0 : index
    %22 = vector.load %arg8[%c0_15, %c0_16] : memref<8x256xbf16, #tpu.memory_space<vmem>>, vector<8x256xbf16>
    %cst_17 = arith.constant dense<0.000000e+00> : vector<8x128xf32>
    %23 = tpu.matmul %22, %21, %cst_17 {dimension_numbers = #tpu.dot_dimension_numbers<[1], [0], [0], [1], [0, 0, 1, 1], [], []>} : vector<8x256xbf16>, vector<256x128xbf16>, vector<8x128xf32> -> vector<8x128xf32>
    %c0_18 = arith.constant 0 : index
    %c0_19 = arith.constant 0 : index
    %24 = vector.load %arg9[%c0_18, %c0_19] : memref<8x1xf32, #tpu.memory_space<vmem>>, vector<8x1xf32>
    %25 = vector.broadcast %24 : vector<8x1xf32> to vector<8x128xf32>
    %26 = arith.addf %23, %25 : vector<8x128xf32>
    %c0_20 = arith.constant 0 : index
    %c0_21 = arith.constant 0 : index
    %27 = vector.load %arg10[%c0_20, %c0_21] : memref<8x128xf32, #tpu.memory_space<vmem>>, vector<8x128xf32>
    tpu.vector_store %arg10[%c0_20, %c0_21], %26 {strides = array<i32>} : memref<8x128xf32, #tpu.memory_space<vmem>>, vector<8x128xf32>,
    return
  }
  func.func @transform_0(%arg0: i32) -> (i32, i32) {
    %c0_i32 = arith.constant 0 : i32
    %c0_i32_0 = arith.constant 0 : i32
    return %c0_i32, %arg0 : i32, i32
  }
  func.func @transform_1(%arg0: i32) -> (i32, i32) {
    %c0_i32 = arith.constant 0 : i32
    %c0_i32_0 = arith.constant 0 : i32
    %c0_i32_1 = arith.constant 0 : i32
    return %c0_i32, %c0_i32_0 : i32, i32
  }
  func.func @transform_2(%arg0: i32) -> (i32, i32) {
    %c0_i32 = arith.constant 0 : i32
    %c0_i32_0 = arith.constant 0 : i32
    %c0_i32_1 = arith.constant 0 : i32
    return %c0_i32, %c0_i32_0 : i32, i32
  }
  func.func @transform_3(%arg0: i32) -> (i32, i32) {
    %c0_i32 = arith.constant 0 : i32
    %c0_i32_0 = arith.constant 0 : i32
    %c0_i32_1 = arith.constant 0 : i32
    return %c0_i32, %c0_i32_0 : i32, i32
  }
  func.func @transform_4(%arg0: i32) -> (i32, i32) {
    %c0_i32 = arith.constant 0 : i32
    %c0_i32_0 = arith.constant 0 : i32
    %c0_i32_1 = arith.constant 0 : i32
    return %c0_i32, %c0_i32_0 : i32, i32
  }
  func.func @transform_5(%arg0: i32) -> (i32, i32) {
    %c0_i32 = arith.constant 0 : i32
    %c0_i32_0 = arith.constant 0 : i32
    %c0_i32_1 = arith.constant 0 : i32
    return %c0_i32, %c0_i32_0 : i32, i32
  }
  func.func @transform_6(%arg0: i32) -> (i32, i32) {
    %c0_i32 = arith.constant 0 : i32
    %c0_i32_0 = arith.constant 0 : i32
    %c0_i32_1 = arith.constant 0 : i32
    return %c0_i32, %c0_i32_0 : i32, i32
  }
  func.func @transform_7(%arg0: i32) -> (i32, i32) {
    %c0_i32 = arith.constant 0 : i32
    %c0_i32_0 = arith.constant 0 : i32
    %c0_i32_1 = arith.constant 0 : i32
    return %c0_i32, %c0_i32_0 : i32, i32
  }
  func.func @transform_8(%arg0: i32) -> (i32, i32) {
    %c0_i32 = arith.constant 0 : i32
    %c0_i32_0 = arith.constant 0 : i32
    %c0_i32_1 = arith.constant 0 : i32
    return %c0_i32, %c0_i32_0 : i32, i32
  }
  func.func @transform_9(%arg0: i32) -> (i32, i32) {
    %c0_i32 = arith.constant 0 : i32
    %c0_i32_0 = arith.constant 0 : i32
    return %c0_i32, %arg0 : i32, i32
  }
}

</mosaic_0001>

<llo_original>
// kernel: tpu_custom_call.1
$region0: #{tpu_custom_call.1}
  #allocation0 [shape = 'u32[]', space=smem, size = 0x4, offset = 0x4, fixed_abs, tag = 'smem constant byte address 0x4 - core index']
  #allocation1 [shape = 'u32[144,128]{1,0:T(1,128)}', space=vmem, size = 0x12000, scoped, tag = 'internal scratch']
  %s0 = inlined_call_operand.vmem [shape: bf16[64,128], index: 0, kind: input, shape index: {}]
  %s1 = inlined_call_operand.vmem [shape: bf16[256,64], index: 1, kind: input, shape index: {}]
  %s2 = inlined_call_operand.vmem [shape: f32[256,1], index: 2, kind: input, shape index: {}]
  %s3 = inlined_call_operand.vmem [shape: bf16[256,256], index: 3, kind: input, shape index: {}]
  %s4 = inlined_call_operand.vmem [shape: f32[256,1], index: 4, kind: input, shape index: {}]
  %s5 = inlined_call_operand.vmem [shape: bf16[256,256], index: 5, kind: input, shape index: {}]
  %s6 = inlined_call_operand.vmem [shape: f32[256,1], index: 6, kind: input, shape index: {}]
  %s7 = inlined_call_operand.vmem [shape: bf16[8,256], index: 7, kind: input, shape index: {}]
  %s8 = inlined_call_operand.vmem [shape: f32[8,1], index: 8, kind: input, shape index: {}]
  %s9 = inlined_call_operand.hbm [shape: f32[8,128], index: 9, kind: output, shape index: {}]
  %s10 = sld [smem:[#allocation0]]
  $region46: #{tpu_custom_call.1} parent=0
    _
  %s12 = ssub.s32 1, %s10
  %s13 = scalar_select 0, %s12, %s10
  $region1: #{tpu_custom_call.1} parent=0
    #allocation2 [shape = 'u8[4096]{0}', space=vmem, size = 0x1000, scoped, tag = 'output window, operand 0, single buffered']
    #allocation3 [shape = 's32[1]{0}', space=sflag, size = 0x4, scoped, tag = 'scoped memory for tpu_custom_call.1']
    %14 = vsyncpa [#allocation3], 0
    // Predicated region
    $region2: #{tpu_custom_call.1} parent=1 // pred_check
      _
    $region3: #{tpu_custom_call.1} parent=1 // pred_check_branch
      %16 = sbr.rel (0) target = $region5
    $region4: #{tpu_custom_call.1} parent=1 // pred_region
      _
    $region5: #{tpu_custom_call.1} parent=1 // pred_fallthru
      _
    // Predicated region
    $region6: #{tpu_custom_call.1} parent=1 // pred_check
      _
    $region7: #{tpu_custom_call.1} parent=1 // pred_check_branch
      %18 = sbr.rel (0) target = $region9
    $region8: #{tpu_custom_call.1} parent=1 // pred_region
      _
    $region9: #{tpu_custom_call.1} parent=1 // pred_fallthru
      _
    // Predicated region
    $region10: #{tpu_custom_call.1} parent=1 // pred_check
      _
    $region11: #{tpu_custom_call.1} parent=1 // pred_check_branch
      %20 = sbr.rel (0) target = $region13
    $region12: #{tpu_custom_call.1} parent=1 // pred_region
      _
    $region13: #{tpu_custom_call.1} parent=1 // pred_fallthru
      _
    // Predicated region
    $region14: #{tpu_custom_call.1} parent=1 // pred_check
      _
    $region15: #{tpu_custom_call.1} parent=1 // pred_check_branch
      %22 = sbr.rel (0) target = $region17
    $region16: #{tpu_custom_call.1} parent=1 // pred_region
      _
    $region17: #{tpu_custom_call.1} parent=1 // pred_fallthru
      _
    // Predicated region
    $region18: #{tpu_custom_call.1} parent=1 // pred_check
      _
    $region19: #{tpu_custom_call.1} parent=1 // pred_check_branch
      %24 = sbr.rel (0) target = $region21
    $region20: #{tpu_custom_call.1} parent=1 // pred_region
      _
    $region21: #{tpu_custom_call.1} parent=1 // pred_fallthru
      _
    // Predicated region
    $region22: #{tpu_custom_call.1} parent=1 // pred_check
      _
    $region23: #{tpu_custom_call.1} parent=1 // pred_check_branch
      %26 = sbr.rel (0) target = $region25
    $region24: #{tpu_custom_call.1} parent=1 // pred_region
      _
    $region25: #{tpu_custom_call.1} parent=1 // pred_fallthru
      _
    // Predicated region
    $region26: #{tpu_custom_call.1} parent=1 // pred_check
      _
    $region27: #{tpu_custom_call.1} parent=1 // pred_check_branch
      %28 = sbr.rel (0) target = $region29
    $region28: #{tpu_custom_call.1} parent=1 // pred_region
      _
    $region29: #{tpu_custom_call.1} parent=1 // pred_fallthru
      _
    // Predicated region
    $region30: #{tpu_custom_call.1} parent=1 // pred_check
      _
    $region31: #{tpu_custom_call.1} parent=1 // pred_check_branch
      %30 = sbr.rel (0) target = $region33
    $region32: #{tpu_custom_call.1} parent=1 // pred_region
      _
    $region33: #{tpu_custom_call.1} parent=1 // pred_fallthru
      _
    // Predicated region
    $region34: #{tpu_custom_call.1} parent=1 // pred_check
      _
    $region35: #{tpu_custom_call.1} parent=1 // pred_check_branch
      %32 = sbr.rel (0) target = $region37
    $region36: #{tpu_custom_call.1} parent=1 // pred_region
      _
    $region37: #{tpu_custom_call.1} parent=1 // pred_fallthru
      _
    %v34 = vld [vmem:[%s0] sm:$0xf]
    %v35 = vld [vmem:[%s0 + $0x4] sm:$0xf]
    %v36 = vld [vmem:[%s0 + $0x8] sm:$0xf]
    %v37 = vld [vmem:[%s0 + $0xc] sm:$0xf]
    %v38 = vld [vmem:[%s0 + $0x10] sm:$0xf]
    %v39 = vld [vmem:[%s0 + $0x14] sm:$0xf]
    %v40 = vld [vmem:[%s0 + $0x18] sm:$0xf]
    %v41 = vld [vmem:[%s0 + $0x1c] sm:$0xf]
    %v42 = vld [vmem:[%s1] sm:$0xf]
    %v43 = vld [vmem:[%s1 + $0x4] sm:$0xf]
    %v44 = vld [vmem:[%s1 + $0x8] sm:$0xf]
    %v45 = vld [vmem:[%s1 + $0xc] sm:$0xf]
    %v46 = vld [vmem:[%s1 + $0x10] sm:$0xf]
    %v47 = vld [vmem:[%s1 + $0x14] sm:$0xf]
    %v48 = vld [vmem:[%s1 + $0x18] sm:$0xf]
    %v49 = vld [vmem:[%s1 + $0x1c] sm:$0xf]
    %v50 = vld [vmem:[%s1 + $0x20] sm:$0xf]
    %v51 = vld [vmem:[%s1 + $0x24] sm:$0xf]
    %v52 = vld [vmem:[%s1 + $0x28] sm:$0xf]
    %v53 = vld [vmem:[%s1 + $0x2c] sm:$0xf]
    %v54 = vld [vmem:[%s1 + $0x30] sm:$0xf]
    %v55 = vld [vmem:[%s1 + $0x34] sm:$0xf]
    %v56 = vld [vmem:[%s1 + $0x38] sm:$0xf]
    %v57 = vld [vmem:[%s1 + $0x3c] sm:$0xf]
    %v58 = vld [vmem:[%s1 + $0x40] sm:$0xf]
    %v59 = vld [vmem:[%s1 + $0x44] sm:$0xf]
    %v60 = vld [vmem:[%s1 + $0x48] sm:$0xf]
    %v61 = vld [vmem:[%s1 + $0x4c] sm:$0xf]
    %v62 = vld [vmem:[%s1 + $0x50] sm:$0xf]
    %v63 = vld [vmem:[%s1 + $0x54] sm:$0xf]
    %v64 = vld [vmem:[%s1 + $0x58] sm:$0xf]
    %v65 = vld [vmem:[%s1 + $0x5c] sm:$0xf]
    %v66 = vld [vmem:[%s1 + $0x60] sm:$0xf]
    %v67 = vld [vmem:[%s1 + $0x64] sm:$0xf]
    %v68 = vld [vmem:[%s1 + $0x68] sm:$0xf]
    %v69 = vld [vmem:[%s1 + $0x6c] sm:$0xf]
    %v70 = vld [vmem:[%s1 + $0x70] sm:$0xf]
    %v71 = vld [vmem:[%s1 + $0x74] sm:$0xf]
    %v72 = vld [vmem:[%s1 + $0x78] sm:$0xf]
    %v73 = vld [vmem:[%s1 + $0x7c] sm:$0xf]
    %v74 = vld [vmem:[%s2] sm:$0xff]
    %v75 = vld [vmem:[%s2 + $0x8] sm:$0xff]
    %v76 = vld [vmem:[%s2 + $0x10] sm:$0xff]
    %v77 = vld [vmem:[%s2 + $0x18] sm:$0xff]
    %v78 = vld [vmem:[%s2 + $0x20] sm:$0xff]
    %v79 = vld [vmem:[%s2 + $0x28] sm:$0xff]
    %v80 = vld [vmem:[%s2 + $0x30] sm:$0xff]
    %v81 = vld [vmem:[%s2 + $0x38] sm:$0xff]
    %v82 = vld [vmem:[%s2 + $0x40] sm:$0xff]
    %v83 = vld [vmem:[%s2 + $0x48] sm:$0xff]
    %v84 = vld [vmem:[%s2 + $0x50] sm:$0xff]
    %v85 = vld [vmem:[%s2 + $0x58] sm:$0xff]
    %v86 = vld [vmem:[%s2 + $0x60] sm:$0xff]
    %v87 = vld [vmem:[%s2 + $0x68] sm:$0xff]
    %v88 = vld [vmem:[%s2 + $0x70] sm:$0xff]
    %v89 = vld [vmem:[%s2 + $0x78] sm:$0xff]
    %v90 = vld [vmem:[%s2 + $0x80] sm:$0xff]
    %v91 = vld [vmem:[%s2 + $0x88] sm:$0xff]
    %v92 = vld [vmem:[%s2 + $0x90] sm:$0xff]
    %v93 = vld [vmem:[%s2 + $0x98] sm:$0xff]
    %v94 = vld [vmem:[%s2 + $0xa0] sm:$0xff]
    %v95 = vld [vmem:[%s2 + $0xa8] sm:$0xff]
    %v96 = vld [vmem:[%s2 + $0xb0] sm:$0xff]
    %v97 = vld [vmem:[%s2 + $0xb8] sm:$0xff]
    %v98 = vld [vmem:[%s2 + $0xc0] sm:$0xff]
    %v99 = vld [vmem:[%s2 + $0xc8] sm:$0xff]
    %v100 = vld [vmem:[%s2 + $0xd0] sm:$0xff]
    %v101 = vld [vmem:[%s2 + $0xd8] sm:$0xff]
    %v102 = vld [vmem:[%s2 + $0xe0] sm:$0xff]
    %v103 = vld [vmem:[%s2 + $0xe8] sm:$0xff]
    %v104 = vld [vmem:[%s2 + $0xf0] sm:$0xff]
    %v105 = vld [vmem:[%s2 + $0xf8] sm:$0xff]
    %107 = vset.pattern.permute.xlu0 0
    %108 = vperm.xlu0 %107, %v74
    %v109 = vpop.permute.xlu0 %108
    %112 = vset.pattern.permute.xlu0 0
    %113 = vperm.xlu0 %112, %v75
    %v114 = vpop.permute.xlu0 %113
    %117 = vset.pattern.permute.xlu0 0
    %118 = vperm.xlu0 %117, %v76
    %v119 = vpop.permute.xlu0 %118
    %122 = vset.pattern.permute.xlu0 0
    %123 = vperm.xlu0 %122, %v77
    %v124 = vpop.permute.xlu0 %123
    %127 = vset.pattern.permute.xlu0 0
    %128 = vperm.xlu0 %127, %v78
    %v129 = vpop.permute.xlu0 %128
    %132 = vset.pattern.permute.xlu0 0
    %133 = vperm.xlu0 %132, %v79
    %v134 = vpop.permute.xlu0 %133
    %137 = vset.pattern.permute.xlu0 0
    %138 = vperm.xlu0 %137, %v80
    %v139 = vpop.permute.xlu0 %138
    %142 = vset.pattern.permute.xlu0 0
    %143 = vperm.xlu0 %142, %v81
    %v144 = vpop.permute.xlu0 %143
    %147 = vset.pattern.permute.xlu0 0
    %148 = vperm.xlu0 %147, %v82
    %v149 = vpop.permute.xlu0 %148
    %152 = vset.pattern.permute.xlu0 0
    %153 = vperm.xlu0 %152, %v83
    %v154 = vpop.permute.xlu0 %153
    %157 = vset.pattern.permute.xlu0 0
    %158 = vperm.xlu0 %157, %v84
    %v159 = vpop.permute.xlu0 %158
    %162 = vset.pattern.permute.xlu0 0
    %163 = vperm.xlu0 %162, %v85
    %v164 = vpop.permute.xlu0 %163
    %167 = vset.pattern.permute.xlu0 0
    %168 = vperm.xlu0 %167, %v86
    %v169 = vpop.permute.xlu0 %168
    %172 = vset.pattern.permute.xlu0 0
    %173 = vperm.xlu0 %172, %v87
    %v174 = vpop.permute.xlu0 %173
    %177 = vset.pattern.permute.xlu0 0
    %178 = vperm.xlu0 %177, %v88
    %v179 = vpop.permute.xlu0 %178
    %182 = vset.pattern.permute.xlu0 0
    %183 = vperm.xlu0 %182, %v89
    %v184 = vpop.permute.xlu0 %183
    %187 = vset.pattern.permute.xlu0 0
    %188 = vperm.xlu0 %187, %v90
    %v189 = vpop.permute.xlu0 %188
    %192 = vset.pattern.permute.xlu0 0
    %193 = vperm.xlu0 %192, %v91
    %v194 = vpop.permute.xlu0 %193
    %197 = vset.pattern.permute.xlu0 0
    %198 = vperm.xlu0 %197, %v92
    %v199 = vpop.permute.xlu0 %198
    %202 = vset.pattern.permute.xlu0 0
    %203 = vperm.xlu0 %202, %v93
    %v204 = vpop.permute.xlu0 %203
    %207 = vset.pattern.permute.xlu0 0
    %208 = vperm.xlu0 %207, %v94
    %v209 = vpop.permute.xlu0 %208
    %212 = vset.pattern.permute.xlu0 0
    %213 = vperm.xlu0 %212, %v95
    %v214 = vpop.permute.xlu0 %213
    %217 = vset.pattern.permute.xlu0 0
    %218 = vperm.xlu0 %217, %v96
    %v219 = vpop.permute.xlu0 %218
    %222 = vset.pattern.permute.xlu0 0
    %223 = vperm.xlu0 %222, %v97
    %v224 = vpop.permute.xlu0 %223
    %227 = vset.pattern.permute.xlu0 0
    %228 = vperm.xlu0 %227, %v98
    %v229 = vpop.permute.xlu0 %228
    %232 = vset.pattern.permute.xlu0 0
    %233 = vperm.xlu0 %232, %v99
    %v234 = vpop.permute.xlu0 %233
    %237 = vset.pattern.permute.xlu0 0
    %238 = vperm.xlu0 %237, %v100
    %v239 = vpop.permute.xlu0 %238
    %242 = vset.pattern.permute.xlu0 0
    %243 = vperm.xlu0 %242, %v101
    %v244 = vpop.permute.xlu0 %243
    %247 = vset.pattern.permute.xlu0 0
    %248 = vperm.xlu0 %247, %v102
    %v249 = vpop.permute.xlu0 %248
    %252 = vset.pattern.permute.xlu0 0
    %253 = vperm.xlu0 %252, %v103
    %v254 = vpop.permute.xlu0 %253
    %257 = vset.pattern.permute.xlu0 0
    %258 = vperm.xlu0 %257, %v104
    %v259 = vpop.permute.xlu0 %258
    %262 = vset.pattern.permute.xlu0 0
    %263 = vperm.xlu0 %262, %v105
    %v264 = vpop.permute.xlu0 %263
    %v298 = vunpack.c.l.b16 %v42
    %v299 = vunpack.c.l.b16 %v43
    %v300 = vunpack.c.l.b16 %v44
    %v301 = vunpack.c.l.b16 %v45
    %v302 = vunpack.c.l.b16 %v46
    %v303 = vunpack.c.l.b16 %v47
    %v304 = vunpack.c.l.b16 %v48
    %v305 = vunpack.c.l.b16 %v49
    %v306 = vunpack.c.l.b16 %v50
    %v307 = vunpack.c.l.b16 %v51
    %v308 = vunpack.c.l.b16 %v52
    %v309 = vunpack.c.l.b16 %v53
    %v310 = vunpack.c.l.b16 %v54
    %v311 = vunpack.c.l.b16 %v55
    %v312 = vunpack.c.l.b16 %v56
    %v313 = vunpack.c.l.b16 %v57
    %v314 = vunpack.c.l.b16 %v58
    %v315 = vunpack.c.l.b16 %v59
    %v316 = vunpack.c.l.b16 %v60
    %v317 = vunpack.c.l.b16 %v61
    %v318 = vunpack.c.l.b16 %v62
    %v319 = vunpack.c.l.b16 %v63
    %v320 = vunpack.c.l.b16 %v64
    %v321 = vunpack.c.l.b16 %v65
    %v322 = vunpack.c.l.b16 %v66
    %v323 = vunpack.c.l.b16 %v67
    %v324 = vunpack.c.l.b16 %v68
    %v325 = vunpack.c.l.b16 %v69
    %v326 = vunpack.c.l.b16 %v70
    %v327 = vunpack.c.l.b16 %v71
    %v328 = vunpack.c.l.b16 %v72
    %v329 = vunpack.c.l.b16 %v73
    %v330 = vpack.c.b16 %v299, %v298
    %v331 = vpack.c.b16 %v301, %v300
    %v332 = vpack.c.b16 %v303, %v302
    %v333 = vpack.c.b16 %v305, %v304
    %v334 = vpack.c.b16 %v307, %v306
    %v335 = vpack.c.b16 %v309, %v308
    %v336 = vpack.c.b16 %v311, %v310
    %v337 = vpack.c.b16 %v313, %v312
    %v338 = vpack.c.b16 %v315, %v314
    %v339 = vpack.c.b16 %v317, %v316
    %v340 = vpack.c.b16 %v319, %v318
    %v341 = vpack.c.b16 %v321, %v320
    %v342 = vpack.c.b16 %v323, %v322
    %v343 = vpack.c.b16 %v325, %v324
    %v344 = vpack.c.b16 %v327, %v326
    %v345 = vpack.c.b16 %v329, %v328
    %v354 = vunpack.c.l.b16 %v34
    %v355 = vunpack.c.l.b16 %v35
    %v356 = vunpack.c.l.b16 %v36
    %v357 = vunpack.c.l.b16 %v37
    %v358 = vunpack.c.l.b16 %v38
    %v359 = vunpack.c.l.b16 %v39
    %v360 = vunpack.c.l.b16 %v40
    %v361 = vunpack.c.l.b16 %v41
    %v362 = vpack.c.b16 %v355, %v354
    %v363 = vpack.c.b16 %v357, %v356
    %v364 = vpack.c.b16 %v359, %v358
    %v365 = vpack.c.b16 %v361, %v360
    %vm370 = vcmask 523264
    %v372 = vsel %vm370, %v330, 0
    %v375 = vsel %vm370, %v331, 0
    %v378 = vsel %vm370, %v332, 0
    %v381 = vsel %vm370, %v333, 0
    %v384 = vsel %vm370, %v334, 0
    %v387 = vsel %vm370, %v335, 0
    %v390 = vsel %vm370, %v336, 0
    %v393 = vsel %vm370, %v337, 0
    %v396 = vsel %vm370, %v338, 0
    %v399 = vsel %vm370, %v339, 0
    %v402 = vsel %vm370, %v340, 0
    %v405 = vsel %vm370, %v341, 0
    %v408 = vsel %vm370, %v342, 0
    %v411 = vsel %vm370, %v343, 0
    %v414 = vsel %vm370, %v344, 0
    %v417 = vsel %vm370, %v345, 0
    %419 = vmatprep.subr.bf16.mxu0 0
    %420 = vmatpush1.bf16.msra.mxu0 0
    %421 = vmatprep.subr.bf16.mxu0 0
    %422 = vmatpush1.bf16.msra.mxu0 0
    %423 = vmatprep.subr.bf16.mxu0 0
    %424 = vmatpush1.bf16.msra.mxu0 0
    %425 = vmatprep.subr.bf16.mxu0 0
    %426 = vmatpush1.bf16.msra.mxu0 0
    %427 = vmatprep.subr.bf16.mxu0 0
    %428 = vmatpush1.bf16.msra.mxu0 %v365
    %429 = vmatprep.subr.bf16.mxu0 0
    %430 = vmatpush1.bf16.msra.mxu0 %v364
    %431 = vmatprep.subr.bf16.mxu0 0
    %432 = vmatpush1.bf16.msra.mxu0 %v363
    %433 = vmatprep.subr.bf16.mxu0 0
    %434 = vmatpush1.bf16.msra.mxu0 %v362
    %435 = vmatprep.subr.bf16.mxu0 0
    %436 = vmatpush2.bf16.msra.mxu0 0
    %437 = vmatprep.subr.bf16.mxu0 0
    %438 = vmatpush2.bf16.msra.mxu0 0
    %439 = vmatprep.subr.bf16.mxu0 0
    %440 = vmatpush2.bf16.msra.mxu0 0
    %441 = vmatprep.subr.bf16.mxu0 0
    %442 = vmatpush2.bf16.msra.mxu0 0
    %443 = vmatprep.subr.bf16.mxu0 0
    %444 = vmatpush2.bf16.msra.mxu0 0
    %445 = vmatprep.subr.bf16.mxu0 0
    %446 = vmatpush2.bf16.msra.mxu0 0
    %447 = vmatprep.subr.bf16.mxu0 0
    %448 = vmatpush2.bf16.msra.mxu0 0
    %449 = vmatprep.subr.bf16.mxu0 0
    %450 = vmatpush2.bf16.msra.mxu0 0
    %451 = vmatprep.mubr.bf16.mxu0 0
    %452 = vmatmul.mubr.bf16.gmra.mxu0 %v372
    %v453 = vpop.f32.mrf.mxu0
    %v454 = vadd.f32 %v109, %v453
    %v455 = vpop.f32.mrf.mxu0
    %v456 = vpop.f32.mrf.mxu0
    %v457 = vadd.f32 %v114, %v456
    %v458 = vpop.f32.mrf.mxu0
    %459 = vmatprep.mubr.bf16.mxu0 0
    %460 = vmatmul.mubr.bf16.gmra.mxu0 %v375
    %v461 = vpop.f32.mrf.mxu0
    %v462 = vadd.f32 %v119, %v461
    %v463 = vpop.f32.mrf.mxu0
    %v464 = vpop.f32.mrf.mxu0
    %v465 = vadd.f32 %v124, %v464
    %v466 = vpop.f32.mrf.mxu0
    %467 = vmatprep.mubr.bf16.mxu0 0
    %468 = vmatmul.mubr.bf16.gmra.mxu0 %v378
    %v469 = vpop.f32.mrf.mxu0
    %v470 = vadd.f32 %v129, %v469
    %v471 = vpop.f32.mrf.mxu0
    %v472 = vpop.f32.mrf.mxu0
    %v473 = vadd.f32 %v134, %v472
    %v474 = vpop.f32.mrf.mxu0
    %475 = vmatprep.mubr.bf16.mxu0 0
    %476 = vmatmul.mubr.bf16.gmra.mxu0 %v381
    %v477 = vpop.f32.mrf.mxu0
    %v478 = vadd.f32 %v139, %v477
    %v479 = vpop.f32.mrf.mxu0
    %v480 = vpop.f32.mrf.mxu0
    %v481 = vadd.f32 %v144, %v480
    %v482 = vpop.f32.mrf.mxu0
    %483 = vmatprep.mubr.bf16.mxu0 0
    %484 = vmatmul.mubr.bf16.gmra.mxu0 %v384
    %v485 = vpop.f32.mrf.mxu0
    %v486 = vadd.f32 %v149, %v485
    %v487 = vpop.f32.mrf.mxu0
    %v488 = vpop.f32.mrf.mxu0
    %v489 = vadd.f32 %v154, %v488
    %v490 = vpop.f32.mrf.mxu0
    %491 = vmatprep.mubr.bf16.mxu0 0
    %492 = vmatmul.mubr.bf16.gmra.mxu0 %v387
    %v493 = vpop.f32.mrf.mxu0
    %v494 = vadd.f32 %v159, %v493
    %v495 = vpop.f32.mrf.mxu0
    %v496 = vpop.f32.mrf.mxu0
    %v497 = vadd.f32 %v164, %v496
    %v498 = vpop.f32.mrf.mxu0
    %499 = vmatprep.mubr.bf16.mxu0 0
    %500 = vmatmul.mubr.bf16.gmra.mxu0 %v390
    %v501 = vpop.f32.mrf.mxu0
    %v502 = vadd.f32 %v169, %v501
    %v503 = vpop.f32.mrf.mxu0
    %v504 = vpop.f32.mrf.mxu0
    %v505 = vadd.f32 %v174, %v504
    %v506 = vpop.f32.mrf.mxu0
    %507 = vmatprep.mubr.bf16.mxu0 0
    %508 = vmatmul.mubr.bf16.gmra.mxu0 %v393
    %v509 = vpop.f32.mrf.mxu0
    %v510 = vadd.f32 %v179, %v509
    %v511 = vpop.f32.mrf.mxu0
    %v512 = vpop.f32.mrf.mxu0
    %v513 = vadd.f32 %v184, %v512
    %v514 = vpop.f32.mrf.mxu0
    %515 = vmatprep.mubr.bf16.mxu0 0
    %516 = vmatmul.mubr.bf16.gmra.mxu0 %v396
    %v517 = vpop.f32.mrf.mxu0
    %v518 = vadd.f32 %v189, %v517
    %v519 = vpop.f32.mrf.mxu0
    %v520 = vpop.f32.mrf.mxu0
    %v521 = vadd.f32 %v194, %v520
    %v522 = vpop.f32.mrf.mxu0
    %523 = vmatprep.mubr.bf16.mxu0 0
    %524 = vmatmul.mubr.bf16.gmra.mxu0 %v399
    %v525 = vpop.f32.mrf.mxu0
    %v526 = vadd.f32 %v199, %v525
    %v527 = vpop.f32.mrf.mxu0
    %v528 = vpop.f32.mrf.mxu0
    %v529 = vadd.f32 %v204, %v528
    %v530 = vpop.f32.mrf.mxu0
    %531 = vmatprep.mubr.bf16.mxu0 0
    %532 = vmatmul.mubr.bf16.gmra.mxu0 %v402
    %v533 = vpop.f32.mrf.mxu0
    %v534 = vadd.f32 %v209, %v533
    %v535 = vpop.f32.mrf.mxu0
    %v536 = vpop.f32.mrf.mxu0
    %v537 = vadd.f32 %v214, %v536
    %v538 = vpop.f32.mrf.mxu0
    %539 = vmatprep.mubr.bf16.mxu0 0
    %540 = vmatmul.mubr.bf16.gmra.mxu0 %v405
    %v541 = vpop.f32.mrf.mxu0
    %v542 = vadd.f32 %v219, %v541
    %v543 = vpop.f32.mrf.mxu0
    %v544 = vpop.f32.mrf.mxu0
    %v545 = vadd.f32 %v224, %v544
    %v546 = vpop.f32.mrf.mxu0
    %547 = vmatprep.mubr.bf16.mxu0 0
    %548 = vmatmul.mubr.bf16.gmra.mxu0 %v408
    %v549 = vpop.f32.mrf.mxu0
    %v550 = vadd.f32 %v229, %v549
    %v551 = vpop.f32.mrf.mxu0
    %v552 = vpop.f32.mrf.mxu0
    %v553 = vadd.f32 %v234, %v552
    %v554 = vpop.f32.mrf.mxu0
    %555 = vmatprep.mubr.bf16.mxu0 0
    %556 = vmatmul.mubr.bf16.gmra.mxu0 %v411
    %v557 = vpop.f32.mrf.mxu0
    %v558 = vadd.f32 %v239, %v557
    %v559 = vpop.f32.mrf.mxu0
    %v560 = vpop.f32.mrf.mxu0
    %v561 = vadd.f32 %v244, %v560
    %v562 = vpop.f32.mrf.mxu0
    %563 = vmatprep.mubr.bf16.mxu0 0
    %564 = vmatmul.mubr.bf16.gmra.mxu0 %v414
    %v565 = vpop.f32.mrf.mxu0
    %v566 = vadd.f32 %v249, %v565
    %v567 = vpop.f32.mrf.mxu0
    %v568 = vpop.f32.mrf.mxu0
    %v569 = vadd.f32 %v254, %v568
    %v570 = vpop.f32.mrf.mxu0
    %571 = vmatprep.mubr.bf16.mxu0 0
    %572 = vmatmul.mubr.bf16.gmra.mxu0 %v417
    %v573 = vpop.f32.mrf.mxu0
    %v574 = vadd.f32 %v259, %v573
    %v575 = vpop.f32.mrf.mxu0
    %v576 = vpop.f32.mrf.mxu0
    %v577 = vadd.f32 %v264, %v576
    %v578 = vpop.f32.mrf.mxu0
    %579 = vdwg.mxu0
    %v580 = vpack.c.bf16 %v457, %v454
    %v581 = vpack.c.bf16 %v465, %v462
    %v582 = vpack.c.bf16 %v473, %v470
    %v583 = vpack.c.bf16 %v481, %v478
    %v584 = vpack.c.bf16 %v489, %v486
    %v585 = vpack.c.bf16 %v497, %v494
    %v586 = vpack.c.bf16 %v505, %v502
    %v587 = vpack.c.bf16 %v513, %v510
    %v588 = vpack.c.bf16 %v521, %v518
    %v589 = vpack.c.bf16 %v529, %v526
    %v590 = vpack.c.bf16 %v537, %v534
    %v591 = vpack.c.bf16 %v545, %v542
    %v592 = vpack.c.bf16 %v553, %v550
    %v593 = vpack.c.bf16 %v561, %v558
    %v594 = vpack.c.bf16 %v569, %v566
    %v595 = vpack.c.bf16 %v577, %v574
    %v596 = vtanh.bf16.pop %v580
    %v597 = vtanh.bf16.pop %v581
    %v598 = vtanh.bf16.pop %v582
    %v599 = vtanh.bf16.pop %v583
    %v600 = vtanh.bf16.pop %v584
    %v601 = vtanh.bf16.pop %v585
    %v602 = vtanh.bf16.pop %v586
    %v603 = vtanh.bf16.pop %v587
    %v604 = vtanh.bf16.pop %v588
    %v605 = vtanh.bf16.pop %v589
    %v606 = vtanh.bf16.pop %v590
    %v607 = vtanh.bf16.pop %v591
    %v608 = vtanh.bf16.pop %v592
    %v609 = vtanh.bf16.pop %v593
    %v610 = vtanh.bf16.pop %v594
    %v611 = vtanh.bf16.pop %v595
    %v612 = vld [vmem:[%s3] sm:$0xff]
    %v613 = vld [vmem:[%s3 + $0x8] sm:$0xff]
    %v614 = vld [vmem:[%s3 + $0x10] sm:$0xff]
    %v615 = vld [vmem:[%s3 + $0x18] sm:$0xff]
    %v616 = vld [vmem:[%s3 + $0x20] sm:$0xff]
    %v617 = vld [vmem:[%s3 + $0x28] sm:$0xff]
    %v618 = vld [vmem:[%s3 + $0x30] sm:$0xff]
    %v619 = vld [vmem:[%s3 + $0x38] sm:$0xff]
    %v620 = vld [vmem:[%s3 + $0x40] sm:$0xff]
    %v621 = vld [vmem:[%s3 + $0x48] sm:$0xff]
    %v622 = vld [vmem:[%s3 + $0x50] sm:$0xff]
    %v623 = vld [vmem:[%s3 + $0x58] sm:$0xff]
    %v624 = vld [vmem:[%s3 + $0x60] sm:$0xff]
    %v625 = vld [vmem:[%s3 + $0x68] sm:$0xff]
    %v626 = vld [vmem:[%s3 + $0x70] sm:$0xff]
    %v627 = vld [vmem:[%s3 + $0x78] sm:$0xff]
    %v628 = vld [vmem:[%s3 + $0x80] sm:$0xff]
    %v629 = vld [vmem:[%s3 + $0x88] sm:$0xff]
    %v630 = vld [vmem:[%s3 + $0x90] sm:$0xff]
    %v631 = vld [vmem:[%s3 + $0x98] sm:$0xff]
    %v632 = vld [vmem:[%s3 + $0xa0] sm:$0xff]
    %v633 = vld [vmem:[%s3 + $0xa8] sm:$0xff]
    %v634 = vld [vmem:[%s3 + $0xb0] sm:$0xff]
    %v635 = vld [vmem:[%s3 + $0xb8] sm:$0xff]
    %v636 = vld [vmem:[%s3 + $0xc0] sm:$0xff]
    %v637 = vld [vmem:[%s3 + $0xc8] sm:$0xff]
    %v638 = vld [vmem:[%s3 + $0xd0] sm:$0xff]
    %v639 = vld [vmem:[%s3 + $0xd8] sm:$0xff]
    %v640 = vld [vmem:[%s3 + $0xe0] sm:$0xff]
    %v641 = vld [vmem:[%s3 + $0xe8] sm:$0xff]
    %v642 = vld [vmem:[%s3 + $0xf0] sm:$0xff]
    %v643 = vld [vmem:[%s3 + $0xf8] sm:$0xff]
    %v644 = vld [vmem:[%s4] sm:$0xff]
    %v645 = vld [vmem:[%s4 + $0x8] sm:$0xff]
    %v646 = vld [vmem:[%s4 + $0x10] sm:$0xff]
    %v647 = vld [vmem:[%s4 + $0x18] sm:$0xff]
    %v648 = vld [vmem:[%s4 + $0x20] sm:$0xff]
    %v649 = vld [vmem:[%s4 + $0x28] sm:$0xff]
    %v650 = vld [vmem:[%s4 + $0x30] sm:$0xff]
    %v651 = vld [vmem:[%s4 + $0x38] sm:$0xff]
    %v652 = vld [vmem:[%s4 + $0x40] sm:$0xff]
    %v653 = vld [vmem:[%s4 + $0x48] sm:$0xff]
    %v654 = vld [vmem:[%s4 + $0x50] sm:$0xff]
    %v655 = vld [vmem:[%s4 + $0x58] sm:$0xff]
    %v656 = vld [vmem:[%s4 + $0x60] sm:$0xff]
    %v657 = vld [vmem:[%s4 + $0x68] sm:$0xff]
    %v658 = vld [vmem:[%s4 + $0x70] sm:$0xff]
    %v659 = vld [vmem:[%s4 + $0x78] sm:$0xff]
    %v660 = vld [vmem:[%s4 + $0x80] sm:$0xff]
    %v661 = vld [vmem:[%s4 + $0x88] sm:$0xff]
    %v662 = vld [vmem:[%s4 + $0x90] sm:$0xff]
    %v663 = vld [vmem:[%s4 + $0x98] sm:$0xff]
    %v664 = vld [vmem:[%s4 + $0xa0] sm:$0xff]
    %v665 = vld [vmem:[%s4 + $0xa8] sm:$0xff]
    %v666 = vld [vmem:[%s4 + $0xb0] sm:$0xff]
    %v667 = vld [vmem:[%s4 + $0xb8] sm:$0xff]
    %v668 = vld [vmem:[%s4 + $0xc0] sm:$0xff]
    %v669 = vld [vmem:[%s4 + $0xc8] sm:$0xff]
    %v670 = vld [vmem:[%s4 + $0xd0] sm:$0xff]
    %v671 = vld [vmem:[%s4 + $0xd8] sm:$0xff]
    %v672 = vld [vmem:[%s4 + $0xe0] sm:$0xff]
    %v673 = vld [vmem:[%s4 + $0xe8] sm:$0xff]
    %v674 = vld [vmem:[%s4 + $0xf0] sm:$0xff]
    %v675 = vld [vmem:[%s4 + $0xf8] sm:$0xff]
    %677 = vset.pattern.permute.xlu0 0
    %678 = vperm.xlu0 %677, %v644
    %v679 = vpop.permute.xlu0 %678
    %682 = vset.pattern.permute.xlu0 0
    %683 = vperm.xlu0 %682, %v645
    %v684 = vpop.permute.xlu0 %683
    %687 = vset.pattern.permute.xlu0 0
    %688 = vperm.xlu0 %687, %v646
    %v689 = vpop.permute.xlu0 %688
    %692 = vset.pattern.permute.xlu0 0
    %693 = vperm.xlu0 %692, %v647
    %v694 = vpop.permute.xlu0 %693
    %697 = vset.pattern.permute.xlu0 0
    %698 = vperm.xlu0 %697, %v648
    %v699 = vpop.permute.xlu0 %698
    %702 = vset.pattern.permute.xlu0 0
    %703 = vperm.xlu0 %702, %v649
    %v704 = vpop.permute.xlu0 %703
    %707 = vset.pattern.permute.xlu0 0
    %708 = vperm.xlu0 %707, %v650
    %v709 = vpop.permute.xlu0 %708
    %712 = vset.pattern.permute.xlu0 0
    %713 = vperm.xlu0 %712, %v651
    %v714 = vpop.permute.xlu0 %713
    %717 = vset.pattern.permute.xlu0 0
    %718 = vperm.xlu0 %717, %v652
    %v719 = vpop.permute.xlu0 %718
    %722 = vset.pattern.permute.xlu0 0
    %723 = vperm.xlu0 %722, %v653
    %v724 = vpop.permute.xlu0 %723
    %727 = vset.pattern.permute.xlu0 0
    %728 = vperm.xlu0 %727, %v654
    %v729 = vpop.permute.xlu0 %728
    %732 = vset.pattern.permute.xlu0 0
    %733 = vperm.xlu0 %732, %v655
    %v734 = vpop.permute.xlu0 %733
    %737 = vset.pattern.permute.xlu0 0
    %738 = vperm.xlu0 %737, %v656
    %v739 = vpop.permute.xlu0 %738
    %742 = vset.pattern.permute.xlu0 0
    %743 = vperm.xlu0 %742, %v657
    %v744 = vpop.permute.xlu0 %743
    %747 = vset.pattern.permute.xlu0 0
    %748 = vperm.xlu0 %747, %v658
    %v749 = vpop.permute.xlu0 %748
    %752 = vset.pattern.permute.xlu0 0
    %753 = vperm.xlu0 %752, %v659
    %v754 = vpop.permute.xlu0 %753
    %757 = vset.pattern.permute.xlu0 0
    %758 = vperm.xlu0 %757, %v660
    %v759 = vpop.permute.xlu0 %758
    %762 = vset.pattern.permute.xlu0 0
    %763 = vperm.xlu0 %762, %v661
    %v764 = vpop.permute.xlu0 %763
    %767 = vset.pattern.permute.xlu0 0
    %768 = vperm.xlu0 %767, %v662
    %v769 = vpop.permute.xlu0 %768
    %772 = vset.pattern.permute.xlu0 0
    %773 = vperm.xlu0 %772, %v663
    %v774 = vpop.permute.xlu0 %773
    %777 = vset.pattern.permute.xlu0 0
    %778 = vperm.xlu0 %777, %v664
    %v779 = vpop.permute.xlu0 %778
    %782 = vset.pattern.permute.xlu0 0
    %783 = vperm.xlu0 %782, %v665
    %v784 = vpop.permute.xlu0 %783
    %787 = vset.pattern.permute.xlu0 0
    %788 = vperm.xlu0 %787, %v666
    %v789 = vpop.permute.xlu0 %788
    %792 = vset.pattern.permute.xlu0 0
    %793 = vperm.xlu0 %792, %v667
    %v794 = vpop.permute.xlu0 %793
    %797 = vset.pattern.permute.xlu0 0
    %798 = vperm.xlu0 %797, %v668
    %v799 = vpop.permute.xlu0 %798
    %802 = vset.pattern.permute.xlu0 0
    %803 = vperm.xlu0 %802, %v669
    %v804 = vpop.permute.xlu0 %803
    %807 = vset.pattern.permute.xlu0 0
    %808 = vperm.xlu0 %807, %v670
    %v809 = vpop.permute.xlu0 %808
    %812 = vset.pattern.permute.xlu0 0
    %813 = vperm.xlu0 %812, %v671
    %v814 = vpop.permute.xlu0 %813
    %817 = vset.pattern.permute.xlu0 0
    %818 = vperm.xlu0 %817, %v672
    %v819 = vpop.permute.xlu0 %818
    %822 = vset.pattern.permute.xlu0 0
    %823 = vperm.xlu0 %822, %v673
    %v824 = vpop.permute.xlu0 %823
    %827 = vset.pattern.permute.xlu0 0
    %828 = vperm.xlu0 %827, %v674
    %v829 = vpop.permute.xlu0 %828
    %832 = vset.pattern.permute.xlu0 0
    %833 = vperm.xlu0 %832, %v675
    %v834 = vpop.permute.xlu0 %833
    %v868 = vunpack.c.l.b16 %v612
    %v869 = vunpack.c.h.b16 %v612
    %v870 = vunpack.c.l.b16 %v613
    %v871 = vunpack.c.h.b16 %v613
    %v872 = vunpack.c.l.b16 %v614
    %v873 = vunpack.c.h.b16 %v614
    %v874 = vunpack.c.l.b16 %v615
    %v875 = vunpack.c.h.b16 %v615
    %v876 = vunpack.c.l.b16 %v616
    %v877 = vunpack.c.h.b16 %v616
    %v878 = vunpack.c.l.b16 %v617
    %v879 = vunpack.c.h.b16 %v617
    %v880 = vunpack.c.l.b16 %v618
    %v881 = vunpack.c.h.b16 %v618
    %v882 = vunpack.c.l.b16 %v619
    %v883 = vunpack.c.h.b16 %v619
    %v884 = vunpack.c.l.b16 %v620
    %v885 = vunpack.c.h.b16 %v620
    %v886 = vunpack.c.l.b16 %v621
    %v887 = vunpack.c.h.b16 %v621
    %v888 = vunpack.c.l.b16 %v622
    %v889 = vunpack.c.h.b16 %v622
    %v890 = vunpack.c.l.b16 %v623
    %v891 = vunpack.c.h.b16 %v623
    %v892 = vunpack.c.l.b16 %v624
    %v893 = vunpack.c.h.b16 %v624
    %v894 = vunpack.c.l.b16 %v625
    %v895 = vunpack.c.h.b16 %v625
    %v896 = vunpack.c.l.b16 %v626
    %v897 = vunpack.c.h.b16 %v626
    %v898 = vunpack.c.l.b16 %v627
    %v899 = vunpack.c.h.b16 %v627
    %v900 = vunpack.c.l.b16 %v628
    %v901 = vunpack.c.h.b16 %v628
    %v902 = vunpack.c.l.b16 %v629
    %v903 = vunpack.c.h.b16 %v629
    %v904 = vunpack.c.l.b16 %v630
    %v905 = vunpack.c.h.b16 %v630
    %v906 = vunpack.c.l.b16 %v631
    %v907 = vunpack.c.h.b16 %v631
    %v908 = vunpack.c.l.b16 %v632
    %v909 = vunpack.c.h.b16 %v632
    %v910 = vunpack.c.l.b16 %v633
    %v911 = vunpack.c.h.b16 %v633
    %v912 = vunpack.c.l.b16 %v634
    %v913 = vunpack.c.h.b16 %v634
    %v914 = vunpack.c.l.b16 %v635
    %v915 = vunpack.c.h.b16 %v635
    %v916 = vunpack.c.l.b16 %v636
    %v917 = vunpack.c.h.b16 %v636
    %v918 = vunpack.c.l.b16 %v637
    %v919 = vunpack.c.h.b16 %v637
    %v920 = vunpack.c.l.b16 %v638
    %v921 = vunpack.c.h.b16 %v638
    %v922 = vunpack.c.l.b16 %v639
    %v923 = vunpack.c.h.b16 %v639
    %v924 = vunpack.c.l.b16 %v640
    %v925 = vunpack.c.h.b16 %v640
    %v926 = vunpack.c.l.b16 %v641
    %v927 = vunpack.c.h.b16 %v641
    %v928 = vunpack.c.l.b16 %v642
    %v929 = vunpack.c.h.b16 %v642
    %v930 = vunpack.c.l.b16 %v643
    %v931 = vunpack.c.h.b16 %v643
    %v932 = vpack.c.b16 %v870, %v868
    %v933 = vpack.c.b16 %v871, %v869
    %v934 = vpack.c.b16 %v874, %v872
    %v935 = vpack.c.b16 %v875, %v873
    %v936 = vpack.c.b16 %v878, %v876
    %v937 = vpack.c.b16 %v879, %v877
    %v938 = vpack.c.b16 %v882, %v880
    %v939 = vpack.c.b16 %v883, %v881
    %v940 = vpack.c.b16 %v886, %v884
    %v941 = vpack.c.b16 %v887, %v885
    %v942 = vpack.c.b16 %v890, %v888
    %v943 = vpack.c.b16 %v891, %v889
    %v944 = vpack.c.b16 %v894, %v892
    %v945 = vpack.c.b16 %v895, %v893
    %v946 = vpack.c.b16 %v898, %v896
    %v947 = vpack.c.b16 %v899, %v897
    %v948 = vpack.c.b16 %v902, %v900
    %v949 = vpack.c.b16 %v903, %v901
    %v950 = vpack.c.b16 %v906, %v904
    %v951 = vpack.c.b16 %v907, %v905
    %v952 = vpack.c.b16 %v910, %v908
    %v953 = vpack.c.b16 %v911, %v909
    %v954 = vpack.c.b16 %v914, %v912
    %v955 = vpack.c.b16 %v915, %v913
    %v956 = vpack.c.b16 %v918, %v916
    %v957 = vpack.c.b16 %v919, %v917
    %v958 = vpack.c.b16 %v922, %v920
    %v959 = vpack.c.b16 %v923, %v921
    %v960 = vpack.c.b16 %v926, %v924
    %v961 = vpack.c.b16 %v927, %v925
    %v962 = vpack.c.b16 %v930, %v928
    %v963 = vpack.c.b16 %v931, %v929
    %996 = vmatprep.subr.bf16.mxu0 0
    %997 = vmatpush1.bf16.msra.mxu0 %v603
    %998 = vmatprep.subr.bf16.mxu0 0
    %999 = vmatpush1.bf16.msra.mxu0 %v602
    %1000 = vmatprep.subr.bf16.mxu0 0
    %1001 = vmatpush1.bf16.msra.mxu0 %v601
    %1002 = vmatprep.subr.bf16.mxu0 0
    %1003 = vmatpush1.bf16.msra.mxu0 %v600
    %1004 = vmatprep.subr.bf16.mxu0 0
    %1005 = vmatpush1.bf16.msra.mxu0 %v599
    %1006 = vmatprep.subr.bf16.mxu0 0
    %1007 = vmatpush1.bf16.msra.mxu0 %v598
    %1008 = vmatprep.subr.bf16.mxu0 0
    %1009 = vmatpush1.bf16.msra.mxu0 %v597
    %1010 = vmatprep.subr.bf16.mxu0 0
    %1011 = vmatpush1.bf16.msra.mxu0 %v596
    %1012 = vmatprep.subr.bf16.mxu0 0
    %1013 = vmatpush2.bf16.msra.mxu0 %v611
    %1014 = vmatprep.subr.bf16.mxu0 0
    %1015 = vmatpush2.bf16.msra.mxu0 %v610
    %1016 = vmatprep.subr.bf16.mxu0 0
    %1017 = vmatpush2.bf16.msra.mxu0 %v609
    %1018 = vmatprep.subr.bf16.mxu0 0
    %1019 = vmatpush2.bf16.msra.mxu0 %v608
    %1020 = vmatprep.subr.bf16.mxu0 0
    %1021 = vmatpush2.bf16.msra.mxu0 %v607
    %1022 = vmatprep.subr.bf16.mxu0 0
    %1023 = vmatpush2.bf16.msra.mxu0 %v606
    %1024 = vmatprep.subr.bf16.mxu0 0
    %1025 = vmatpush2.bf16.msra.mxu0 %v605
    %1026 = vmatprep.subr.bf16.mxu0 0
    %1027 = vmatpush2.bf16.msra.mxu0 %v604
    %1028 = vmatprep.mubr.bf16.mxu0 %v933
    %1029 = vmatmul.mubr.bf16.gmra.mxu0 %v932
    %v1030 = vpop.f32.mrf.mxu0
    %v1031 = vadd.f32 %v679, %v1030
    %v1032 = vpop.f32.mrf.mxu0
    %v1033 = vpop.f32.mrf.mxu0
    %v1034 = vadd.f32 %v684, %v1033
    %v1035 = vpop.f32.mrf.mxu0
    %1036 = vmatprep.mubr.bf16.mxu0 %v935
    %1037 = vmatmul.mubr.bf16.gmra.mxu0 %v934
    %v1038 = vpop.f32.mrf.mxu0
    %v1039 = vadd.f32 %v689, %v1038
    %v1040 = vpop.f32.mrf.mxu0
    %v1041 = vpop.f32.mrf.mxu0
    %v1042 = vadd.f32 %v694, %v1041
    %v1043 = vpop.f32.mrf.mxu0
    %1044 = vmatprep.mubr.bf16.mxu0 %v937
    %1045 = vmatmul.mubr.bf16.gmra.mxu0 %v936
    %v1046 = vpop.f32.mrf.mxu0
    %v1047 = vadd.f32 %v699, %v1046
    %v1048 = vpop.f32.mrf.mxu0
    %v1049 = vpop.f32.mrf.mxu0
    %v1050 = vadd.f32 %v704, %v1049
    %v1051 = vpop.f32.mrf.mxu0
    %1052 = vmatprep.mubr.bf16.mxu0 %v939
    %1053 = vmatmul.mubr.bf16.gmra.mxu0 %v938
    %v1054 = vpop.f32.mrf.mxu0
    %v1055 = vadd.f32 %v709, %v1054
    %v1056 = vpop.f32.mrf.mxu0
    %v1057 = vpop.f32.mrf.mxu0
    %v1058 = vadd.f32 %v714, %v1057
    %v1059 = vpop.f32.mrf.mxu0
    %1060 = vmatprep.mubr.bf16.mxu0 %v941
    %1061 = vmatmul.mubr.bf16.gmra.mxu0 %v940
    %v1062 = vpop.f32.mrf.mxu0
    %v1063 = vadd.f32 %v719, %v1062
    %v1064 = vpop.f32.mrf.mxu0
    %v1065 = vpop.f32.mrf.mxu0
    %v1066 = vadd.f32 %v724, %v1065
    %v1067 = vpop.f32.mrf.mxu0
    %1068 = vmatprep.mubr.bf16.mxu0 %v943
    %1069 = vmatmul.mubr.bf16.gmra.mxu0 %v942
    %v1070 = vpop.f32.mrf.mxu0
    %v1071 = vadd.f32 %v729, %v1070
    %v1072 = vpop.f32.mrf.mxu0
    %v1073 = vpop.f32.mrf.mxu0
    %v1074 = vadd.f32 %v734, %v1073
    %v1075 = vpop.f32.mrf.mxu0
    %1076 = vmatprep.mubr.bf16.mxu0 %v945
    %1077 = vmatmul.mubr.bf16.gmra.mxu0 %v944
    %v1078 = vpop.f32.mrf.mxu0
    %v1079 = vadd.f32 %v739, %v1078
    %v1080 = vpop.f32.mrf.mxu0
    %v1081 = vpop.f32.mrf.mxu0
    %v1082 = vadd.f32 %v744, %v1081
    %v1083 = vpop.f32.mrf.mxu0
    %1084 = vmatprep.mubr.bf16.mxu0 %v947
    %1085 = vmatmul.mubr.bf16.gmra.mxu0 %v946
    %v1086 = vpop.f32.mrf.mxu0
    %v1087 = vadd.f32 %v749, %v1086
    %v1088 = vpop.f32.mrf.mxu0
    %v1089 = vpop.f32.mrf.mxu0
    %v1090 = vadd.f32 %v754, %v1089
    %v1091 = vpop.f32.mrf.mxu0
    %1092 = vmatprep.mubr.bf16.mxu0 %v949
    %1093 = vmatmul.mubr.bf16.gmra.mxu0 %v948
    %v1094 = vpop.f32.mrf.mxu0
    %v1095 = vadd.f32 %v759, %v1094
    %v1096 = vpop.f32.mrf.mxu0
    %v1097 = vpop.f32.mrf.mxu0
    %v1098 = vadd.f32 %v764, %v1097
    %v1099 = vpop.f32.mrf.mxu0
    %1100 = vmatprep.mubr.bf16.mxu0 %v951
    %1101 = vmatmul.mubr.bf16.gmra.mxu0 %v950
    %v1102 = vpop.f32.mrf.mxu0
    %v1103 = vadd.f32 %v769, %v1102
    %v1104 = vpop.f32.mrf.mxu0
    %v1105 = vpop.f32.mrf.mxu0
    %v1106 = vadd.f32 %v774, %v1105
    %v1107 = vpop.f32.mrf.mxu0
    %1108 = vmatprep.mubr.bf16.mxu0 %v953
    %1109 = vmatmul.mubr.bf16.gmra.mxu0 %v952
    %v1110 = vpop.f32.mrf.mxu0
    %v1111 = vadd.f32 %v779, %v1110
    %v1112 = vpop.f32.mrf.mxu0
    %v1113 = vpop.f32.mrf.mxu0
    %v1114 = vadd.f32 %v784, %v1113
    %v1115 = vpop.f32.mrf.mxu0
    %1116 = vmatprep.mubr.bf16.mxu0 %v955
    %1117 = vmatmul.mubr.bf16.gmra.mxu0 %v954
    %v1118 = vpop.f32.mrf.mxu0
    %v1119 = vadd.f32 %v789, %v1118
    %v1120 = vpop.f32.mrf.mxu0
    %v1121 = vpop.f32.mrf.mxu0
    %v1122 = vadd.f32 %v794, %v1121
    %v1123 = vpop.f32.mrf.mxu0
    %1124 = vmatprep.mubr.bf16.mxu0 %v957
    %1125 = vmatmul.mubr.bf16.gmra.mxu0 %v956
    %v1126 = vpop.f32.mrf.mxu0
    %v1127 = vadd.f32 %v799, %v1126
    %v1128 = vpop.f32.mrf.mxu0
    %v1129 = vpop.f32.mrf.mxu0
    %v1130 = vadd.f32 %v804, %v1129
    %v1131 = vpop.f32.mrf.mxu0
    %1132 = vmatprep.mubr.bf16.mxu0 %v959
    %1133 = vmatmul.mubr.bf16.gmra.mxu0 %v958
    %v1134 = vpop.f32.mrf.mxu0
    %v1135 = vadd.f32 %v809, %v1134
    %v1136 = vpop.f32.mrf.mxu0
    %v1137 = vpop.f32.mrf.mxu0
    %v1138 = vadd.f32 %v814, %v1137
    %v1139 = vpop.f32.mrf.mxu0
    %1140 = vmatprep.mubr.bf16.mxu0 %v961
    %1141 = vmatmul.mubr.bf16.gmra.mxu0 %v960
    %v1142 = vpop.f32.mrf.mxu0
    %v1143 = vadd.f32 %v819, %v1142
    %v1144 = vpop.f32.mrf.mxu0
    %v1145 = vpop.f32.mrf.mxu0
    %v1146 = vadd.f32 %v824, %v1145
    %v1147 = vpop.f32.mrf.mxu0
    %1148 = vmatprep.mubr.bf16.mxu0 %v963
    %1149 = vmatmul.mubr.bf16.gmra.mxu0 %v962
    %v1150 = vpop.f32.mrf.mxu0
    %v1151 = vadd.f32 %v829, %v1150
    %v1152 = vpop.f32.mrf.mxu0
    %v1153 = vpop.f32.mrf.mxu0
    %v1154 = vadd.f32 %v834, %v1153
    %v1155 = vpop.f32.mrf.mxu0
    %1156 = vdwg.mxu0
    %v1157 = vpack.c.bf16 %v1034, %v1031
    %v1158 = vpack.c.bf16 %v1042, %v1039
    %v1159 = vpack.c.bf16 %v1050, %v1047
    %v1160 = vpack.c.bf16 %v1058, %v1055
    %v1161 = vpack.c.bf16 %v1066, %v1063
    %v1162 = vpack.c.bf16 %v1074, %v1071
    %v1163 = vpack.c.bf16 %v1082, %v1079
    %v1164 = vpack.c.bf16 %v1090, %v1087
    %v1165 = vpack.c.bf16 %v1098, %v1095
    %v1166 = vpack.c.bf16 %v1106, %v1103
    %v1167 = vpack.c.bf16 %v1114, %v1111
    %v1168 = vpack.c.bf16 %v1122, %v1119
    %v1169 = vpack.c.bf16 %v1130, %v1127
    %v1170 = vpack.c.bf16 %v1138, %v1135
    %v1171 = vpack.c.bf16 %v1146, %v1143
    %v1172 = vpack.c.bf16 %v1154, %v1151
    %v1173 = vtanh.bf16.pop %v1157
    %v1174 = vtanh.bf16.pop %v1158
    %v1175 = vtanh.bf16.pop %v1159
    %v1176 = vtanh.bf16.pop %v1160
    %v1177 = vtanh.bf16.pop %v1161
    %v1178 = vtanh.bf16.pop %v1162
    %v1179 = vtanh.bf16.pop %v1163
    %v1180 = vtanh.bf16.pop %v1164
    %v1181 = vtanh.bf16.pop %v1165
    %v1182 = vtanh.bf16.pop %v1166
    %v1183 = vtanh.bf16.pop %v1167
    %v1184 = vtanh.bf16.pop %v1168
    %v1185 = vtanh.bf16.pop %v1169
    %v1186 = vtanh.bf16.pop %v1170
    %v1187 = vtanh.bf16.pop %v1171
    %v1188 = vtanh.bf16.pop %v1172
    %v1189 = vld [vmem:[%s5] sm:$0xff]
    %v1190 = vld [vmem:[%s5 + $0x8] sm:$0xff]
    %v1191 = vld [vmem:[%s5 + $0x10] sm:$0xff]
    %v1192 = vld [vmem:[%s5 + $0x18] sm:$0xff]
    %v1193 = vld [vmem:[%s5 + $0x20] sm:$0xff]
    %v1194 = vld [vmem:[%s5 + $0x28] sm:$0xff]
    %v1195 = vld [vmem:[%s5 + $0x30] sm:$0xff]
    %v1196 = vld [vmem:[%s5 + $0x38] sm:$0xff]
    %v1197 = vld [vmem:[%s5 + $0x40] sm:$0xff]
    %v1198 = vld [vmem:[%s5 + $0x48] sm:$0xff]
    %v1199 = vld [vmem:[%s5 + $0x50] sm:$0xff]
    %v1200 = vld [vmem:[%s5 + $0x58] sm:$0xff]
    %v1201 = vld [vmem:[%s5 + $0x60] sm:$0xff]
    %v1202 = vld [vmem:[%s5 + $0x68] sm:$0xff]
    %v1203 = vld [vmem:[%s5 + $0x70] sm:$0xff]
    %v1204 = vld [vmem:[%s5 + $0x78] sm:$0xff]
    %v1205 = vld [vmem:[%s5 + $0x80] sm:$0xff]
    %v1206 = vld [vmem:[%s5 + $0x88] sm:$0xff]
    %v1207 = vld [vmem:[%s5 + $0x90] sm:$0xff]
    %v1208 = vld [vmem:[%s5 + $0x98] sm:$0xff]
    %v1209 = vld [vmem:[%s5 + $0xa0] sm:$0xff]
    %v1210 = vld [vmem:[%s5 + $0xa8] sm:$0xff]
    %v1211 = vld [vmem:[%s5 + $0xb0] sm:$0xff]
    %v1212 = vld [vmem:[%s5 + $0xb8] sm:$0xff]
    %v1213 = vld [vmem:[%s5 + $0xc0] sm:$0xff]
    %v1214 = vld [vmem:[%s5 + $0xc8] sm:$0xff]
    %v1215 = vld [vmem:[%s5 + $0xd0] sm:$0xff]
    %v1216 = vld [vmem:[%s5 + $0xd8] sm:$0xff]
    %v1217 = vld [vmem:[%s5 + $0xe0] sm:$0xff]
    %v1218 = vld [vmem:[%s5 + $0xe8] sm:$0xff]
    %v1219 = vld [vmem:[%s5 + $0xf0] sm:$0xff]
    %v1220 = vld [vmem:[%s5 + $0xf8] sm:$0xff]
    %v1221 = vld [vmem:[%s6] sm:$0xff]
    %v1222 = vld [vmem:[%s6 + $0x8] sm:$0xff]
    %v1223 = vld [vmem:[%s6 + $0x10] sm:$0xff]
    %v1224 = vld [vmem:[%s6 + $0x18] sm:$0xff]
    %v1225 = vld [vmem:[%s6 + $0x20] sm:$0xff]
    %v1226 = vld [vmem:[%s6 + $0x28] sm:$0xff]
    %v1227 = vld [vmem:[%s6 + $0x30] sm:$0xff]
    %v1228 = vld [vmem:[%s6 + $0x38] sm:$0xff]
    %v1229 = vld [vmem:[%s6 + $0x40] sm:$0xff]
    %v1230 = vld [vmem:[%s6 + $0x48] sm:$0xff]
    %v1231 = vld [vmem:[%s6 + $0x50] sm:$0xff]
    %v1232 = vld [vmem:[%s6 + $0x58] sm:$0xff]
    %v1233 = vld [vmem:[%s6 + $0x60] sm:$0xff]
    %v1234 = vld [vmem:[%s6 + $0x68] sm:$0xff]
    %v1235 = vld [vmem:[%s6 + $0x70] sm:$0xff]
    %v1236 = vld [vmem:[%s6 + $0x78] sm:$0xff]
    %v1237 = vld [vmem:[%s6 + $0x80] sm:$0xff]
    %v1238 = vld [vmem:[%s6 + $0x88] sm:$0xff]
    %v1239 = vld [vmem:[%s6 + $0x90] sm:$0xff]
    %v1240 = vld [vmem:[%s6 + $0x98] sm:$0xff]
    %v1241 = vld [vmem:[%s6 + $0xa0] sm:$0xff]
    %v1242 = vld [vmem:[%s6 + $0xa8] sm:$0xff]
    %v1243 = vld [vmem:[%s6 + $0xb0] sm:$0xff]
    %v1244 = vld [vmem:[%s6 + $0xb8] sm:$0xff]
    %v1245 = vld [vmem:[%s6 + $0xc0] sm:$0xff]
    %v1246 = vld [vmem:[%s6 + $0xc8] sm:$0xff]
    %v1247 = vld [vmem:[%s6 + $0xd0] sm:$0xff]
    %v1248 = vld [vmem:[%s6 + $0xd8] sm:$0xff]
    %v1249 = vld [vmem:[%s6 + $0xe0] sm:$0xff]
    %v1250 = vld [vmem:[%s6 + $0xe8] sm:$0xff]
    %v1251 = vld [vmem:[%s6 + $0xf0] sm:$0xff]
    %v1252 = vld [vmem:[%s6 + $0xf8] sm:$0xff]
    %1254 = vset.pattern.permute.xlu0 0
    %1255 = vperm.xlu0 %1254, %v1221
    %v1256 = vpop.permute.xlu0 %1255
    %1259 = vset.pattern.permute.xlu0 0
    %1260 = vperm.xlu0 %1259, %v1222
    %v1261 = vpop.permute.xlu0 %1260
    %1264 = vset.pattern.permute.xlu0 0
    %1265 = vperm.xlu0 %1264, %v1223
    %v1266 = vpop.permute.xlu0 %1265
    %1269 = vset.pattern.permute.xlu0 0
    %1270 = vperm.xlu0 %1269, %v1224
    %v1271 = vpop.permute.xlu0 %1270
    %1274 = vset.pattern.permute.xlu0 0
    %1275 = vperm.xlu0 %1274, %v1225
    %v1276 = vpop.permute.xlu0 %1275
    %1279 = vset.pattern.permute.xlu0 0
    %1280 = vperm.xlu0 %1279, %v1226
    %v1281 = vpop.permute.xlu0 %1280
    %1284 = vset.pattern.permute.xlu0 0
    %1285 = vperm.xlu0 %1284, %v1227
    %v1286 = vpop.permute.xlu0 %1285
    %1289 = vset.pattern.permute.xlu0 0
    %1290 = vperm.xlu0 %1289, %v1228
    %v1291 = vpop.permute.xlu0 %1290
    %1294 = vset.pattern.permute.xlu0 0
    %1295 = vperm.xlu0 %1294, %v1229
    %v1296 = vpop.permute.xlu0 %1295
    %1299 = vset.pattern.permute.xlu0 0
    %1300 = vperm.xlu0 %1299, %v1230
    %v1301 = vpop.permute.xlu0 %1300
    %1304 = vset.pattern.permute.xlu0 0
    %1305 = vperm.xlu0 %1304, %v1231
    %v1306 = vpop.permute.xlu0 %1305
    %1309 = vset.pattern.permute.xlu0 0
    %1310 = vperm.xlu0 %1309, %v1232
    %v1311 = vpop.permute.xlu0 %1310
    %1314 = vset.pattern.permute.xlu0 0
    %1315 = vperm.xlu0 %1314, %v1233
    %v1316 = vpop.permute.xlu0 %1315
    %1319 = vset.pattern.permute.xlu0 0
    %1320 = vperm.xlu0 %1319, %v1234
    %v1321 = vpop.permute.xlu0 %1320
    %1324 = vset.pattern.permute.xlu0 0
    %1325 = vperm.xlu0 %1324, %v1235
    %v1326 = vpop.permute.xlu0 %1325
    %1329 = vset.pattern.permute.xlu0 0
    %1330 = vperm.xlu0 %1329, %v1236
    %v1331 = vpop.permute.xlu0 %1330
    %1334 = vset.pattern.permute.xlu0 0
    %1335 = vperm.xlu0 %1334, %v1237
    %v1336 = vpop.permute.xlu0 %1335
    %1339 = vset.pattern.permute.xlu0 0
    %1340 = vperm.xlu0 %1339, %v1238
    %v1341 = vpop.permute.xlu0 %1340
    %1344 = vset.pattern.permute.xlu0 0
    %1345 = vperm.xlu0 %1344, %v1239
    %v1346 = vpop.permute.xlu0 %1345
    %1349 = vset.pattern.permute.xlu0 0
    %1350 = vperm.xlu0 %1349, %v1240
    %v1351 = vpop.permute.xlu0 %1350
    %1354 = vset.pattern.permute.xlu0 0
    %1355 = vperm.xlu0 %1354, %v1241
    %v1356 = vpop.permute.xlu0 %1355
    %1359 = vset.pattern.permute.xlu0 0
    %1360 = vperm.xlu0 %1359, %v1242
    %v1361 = vpop.permute.xlu0 %1360
    %1364 = vset.pattern.permute.xlu0 0
    %1365 = vperm.xlu0 %1364, %v1243
    %v1366 = vpop.permute.xlu0 %1365
    %1369 = vset.pattern.permute.xlu0 0
    %1370 = vperm.xlu0 %1369, %v1244
    %v1371 = vpop.permute.xlu0 %1370
    %1374 = vset.pattern.permute.xlu0 0
    %1375 = vperm.xlu0 %1374, %v1245
    %v1376 = vpop.permute.xlu0 %1375
    %1379 = vset.pattern.permute.xlu0 0
    %1380 = vperm.xlu0 %1379, %v1246
    %v1381 = vpop.permute.xlu0 %1380
    %1384 = vset.pattern.permute.xlu0 0
    %1385 = vperm.xlu0 %1384, %v1247
    %v1386 = vpop.permute.xlu0 %1385
    %1389 = vset.pattern.permute.xlu0 0
    %1390 = vperm.xlu0 %1389, %v1248
    %v1391 = vpop.permute.xlu0 %1390
    %1394 = vset.pattern.permute.xlu0 0
    %1395 = vperm.xlu0 %1394, %v1249
    %v1396 = vpop.permute.xlu0 %1395
    %1399 = vset.pattern.permute.xlu0 0
    %1400 = vperm.xlu0 %1399, %v1250
    %v1401 = vpop.permute.xlu0 %1400
    %1404 = vset.pattern.permute.xlu0 0
    %1405 = vperm.xlu0 %1404, %v1251
    %v1406 = vpop.permute.xlu0 %1405
    %1409 = vset.pattern.permute.xlu0 0
    %1410 = vperm.xlu0 %1409, %v1252
    %v1411 = vpop.permute.xlu0 %1410
    %v1445 = vunpack.c.l.b16 %v1189
    %v1446 = vunpack.c.h.b16 %v1189
    %v1447 = vunpack.c.l.b16 %v1190
    %v1448 = vunpack.c.h.b16 %v1190
    %v1449 = vunpack.c.l.b16 %v1191
    %v1450 = vunpack.c.h.b16 %v1191
    %v1451 = vunpack.c.l.b16 %v1192
    %v1452 = vunpack.c.h.b16 %v1192
    %v1453 = vunpack.c.l.b16 %v1193
    %v1454 = vunpack.c.h.b16 %v1193
    %v1455 = vunpack.c.l.b16 %v1194
    %v1456 = vunpack.c.h.b16 %v1194
    %v1457 = vunpack.c.l.b16 %v1195
    %v1458 = vunpack.c.h.b16 %v1195
    %v1459 = vunpack.c.l.b16 %v1196
    %v1460 = vunpack.c.h.b16 %v1196
    %v1461 = vunpack.c.l.b16 %v1197
    %v1462 = vunpack.c.h.b16 %v1197
    %v1463 = vunpack.c.l.b16 %v1198
    %v1464 = vunpack.c.h.b16 %v1198
    %v1465 = vunpack.c.l.b16 %v1199
    %v1466 = vunpack.c.h.b16 %v1199
    %v1467 = vunpack.c.l.b16 %v1200
    %v1468 = vunpack.c.h.b16 %v1200
    %v1469 = vunpack.c.l.b16 %v1201
    %v1470 = vunpack.c.h.b16 %v1201
    %v1471 = vunpack.c.l.b16 %v1202
    %v1472 = vunpack.c.h.b16 %v1202
    %v1473 = vunpack.c.l.b16 %v1203
    %v1474 = vunpack.c.h.b16 %v1203
    %v1475 = vunpack.c.l.b16 %v1204
    %v1476 = vunpack.c.h.b16 %v1204
    %v1477 = vunpack.c.l.b16 %v1205
    %v1478 = vunpack.c.h.b16 %v1205
    %v1479 = vunpack.c.l.b16 %v1206
    %v1480 = vunpack.c.h.b16 %v1206
    %v1481 = vunpack.c.l.b16 %v1207
    %v1482 = vunpack.c.h.b16 %v1207
    %v1483 = vunpack.c.l.b16 %v1208
    %v1484 = vunpack.c.h.b16 %v1208
    %v1485 = vunpack.c.l.b16 %v1209
    %v1486 = vunpack.c.h.b16 %v1209
    %v1487 = vunpack.c.l.b16 %v1210
    %v1488 = vunpack.c.h.b16 %v1210
    %v1489 = vunpack.c.l.b16 %v1211
    %v1490 = vunpack.c.h.b16 %v1211
    %v1491 = vunpack.c.l.b16 %v1212
    %v1492 = vunpack.c.h.b16 %v1212
    %v1493 = vunpack.c.l.b16 %v1213
    %v1494 = vunpack.c.h.b16 %v1213
    %v1495 = vunpack.c.l.b16 %v1214
    %v1496 = vunpack.c.h.b16 %v1214
    %v1497 = vunpack.c.l.b16 %v1215
    %v1498 = vunpack.c.h.b16 %v1215
    %v1499 = vunpack.c.l.b16 %v1216
    %v1500 = vunpack.c.h.b16 %v1216
    %v1501 = vunpack.c.l.b16 %v1217
    %v1502 = vunpack.c.h.b16 %v1217
    %v1503 = vunpack.c.l.b16 %v1218
    %v1504 = vunpack.c.h.b16 %v1218
    %v1505 = vunpack.c.l.b16 %v1219
    %v1506 = vunpack.c.h.b16 %v1219
    %v1507 = vunpack.c.l.b16 %v1220
    %v1508 = vunpack.c.h.b16 %v1220
    %v1509 = vpack.c.b16 %v1447, %v1445
    %v1510 = vpack.c.b16 %v1448, %v1446
    %v1511 = vpack.c.b16 %v1451, %v1449
    %v1512 = vpack.c.b16 %v1452, %v1450
    %v1513 = vpack.c.b16 %v1455, %v1453
    %v1514 = vpack.c.b16 %v1456, %v1454
    %v1515 = vpack.c.b16 %v1459, %v1457
    %v1516 = vpack.c.b16 %v1460, %v1458
    %v1517 = vpack.c.b16 %v1463, %v1461
    %v1518 = vpack.c.b16 %v1464, %v1462
    %v1519 = vpack.c.b16 %v1467, %v1465
    %v1520 = vpack.c.b16 %v1468, %v1466
    %v1521 = vpack.c.b16 %v1471, %v1469
    %v1522 = vpack.c.b16 %v1472, %v1470
    %v1523 = vpack.c.b16 %v1475, %v1473
    %v1524 = vpack.c.b16 %v1476, %v1474
    %v1525 = vpack.c.b16 %v1479, %v1477
    %v1526 = vpack.c.b16 %v1480, %v1478
    %v1527 = vpack.c.b16 %v1483, %v1481
    %v1528 = vpack.c.b16 %v1484, %v1482
    %v1529 = vpack.c.b16 %v1487, %v1485
    %v1530 = vpack.c.b16 %v1488, %v1486
    %v1531 = vpack.c.b16 %v1491, %v1489
    %v1532 = vpack.c.b16 %v1492, %v1490
    %v1533 = vpack.c.b16 %v1495, %v1493
    %v1534 = vpack.c.b16 %v1496, %v1494
    %v1535 = vpack.c.b16 %v1499, %v1497
    %v1536 = vpack.c.b16 %v1500, %v1498
    %v1537 = vpack.c.b16 %v1503, %v1501
    %v1538 = vpack.c.b16 %v1504, %v1502
    %v1539 = vpack.c.b16 %v1507, %v1505
    %v1540 = vpack.c.b16 %v1508, %v1506
    %1573 = vmatprep.subr.bf16.mxu0 0
    %1574 = vmatpush1.bf16.msra.mxu0 %v1180
    %1575 = vmatprep.subr.bf16.mxu0 0
    %1576 = vmatpush1.bf16.msra.mxu0 %v1179
    %1577 = vmatprep.subr.bf16.mxu0 0
    %1578 = vmatpush1.bf16.msra.mxu0 %v1178
    %1579 = vmatprep.subr.bf16.mxu0 0
    %1580 = vmatpush1.bf16.msra.mxu0 %v1177
    %1581 = vmatprep.subr.bf16.mxu0 0
    %1582 = vmatpush1.bf16.msra.mxu0 %v1176
    %1583 = vmatprep.subr.bf16.mxu0 0
    %1584 = vmatpush1.bf16.msra.mxu0 %v1175
    %1585 = vmatprep.subr.bf16.mxu0 0
    %1586 = vmatpush1.bf16.msra.mxu0 %v1174
    %1587 = vmatprep.subr.bf16.mxu0 0
    %1588 = vmatpush1.bf16.msra.mxu0 %v1173
    %1589 = vmatprep.subr.bf16.mxu0 0
    %1590 = vmatpush2.bf16.msra.mxu0 %v1188
    %1591 = vmatprep.subr.bf16.mxu0 0
    %1592 = vmatpush2.bf16.msra.mxu0 %v1187
    %1593 = vmatprep.subr.bf16.mxu0 0
    %1594 = vmatpush2.bf16.msra.mxu0 %v1186
    %1595 = vmatprep.subr.bf16.mxu0 0
    %1596 = vmatpush2.bf16.msra.mxu0 %v1185
    %1597 = vmatprep.subr.bf16.mxu0 0
    %1598 = vmatpush2.bf16.msra.mxu0 %v1184
    %1599 = vmatprep.subr.bf16.mxu0 0
    %1600 = vmatpush2.bf16.msra.mxu0 %v1183
    %1601 = vmatprep.subr.bf16.mxu0 0
    %1602 = vmatpush2.bf16.msra.mxu0 %v1182
    %1603 = vmatprep.subr.bf16.mxu0 0
    %1604 = vmatpush2.bf16.msra.mxu0 %v1181
    %1605 = vmatprep.mubr.bf16.mxu0 %v1510
    %1606 = vmatmul.mubr.bf16.gmra.mxu0 %v1509
    %v1607 = vpop.f32.mrf.mxu0
    %v1608 = vadd.f32 %v1256, %v1607
    %v1609 = vpop.f32.mrf.mxu0
    %v1610 = vpop.f32.mrf.mxu0
    %v1611 = vadd.f32 %v1261, %v1610
    %v1612 = vpop.f32.mrf.mxu0
    %1613 = vmatprep.mubr.bf16.mxu0 %v1512
    %1614 = vmatmul.mubr.bf16.gmra.mxu0 %v1511
    %v1615 = vpop.f32.mrf.mxu0
    %v1616 = vadd.f32 %v1266, %v1615
    %v1617 = vpop.f32.mrf.mxu0
    %v1618 = vpop.f32.mrf.mxu0
    %v1619 = vadd.f32 %v1271, %v1618
    %v1620 = vpop.f32.mrf.mxu0
    %1621 = vmatprep.mubr.bf16.mxu0 %v1514
    %1622 = vmatmul.mubr.bf16.gmra.mxu0 %v1513
    %v1623 = vpop.f32.mrf.mxu0
    %v1624 = vadd.f32 %v1276, %v1623
    %v1625 = vpop.f32.mrf.mxu0
    %v1626 = vpop.f32.mrf.mxu0
    %v1627 = vadd.f32 %v1281, %v1626
    %v1628 = vpop.f32.mrf.mxu0
    %1629 = vmatprep.mubr.bf16.mxu0 %v1516
    %1630 = vmatmul.mubr.bf16.gmra.mxu0 %v1515
    %v1631 = vpop.f32.mrf.mxu0
    %v1632 = vadd.f32 %v1286, %v1631
    %v1633 = vpop.f32.mrf.mxu0
    %v1634 = vpop.f32.mrf.mxu0
    %v1635 = vadd.f32 %v1291, %v1634
    %v1636 = vpop.f32.mrf.mxu0
    %1637 = vmatprep.mubr.bf16.mxu0 %v1518
    %1638 = vmatmul.mubr.bf16.gmra.mxu0 %v1517
    %v1639 = vpop.f32.mrf.mxu0
    %v1640 = vadd.f32 %v1296, %v1639
    %v1641 = vpop.f32.mrf.mxu0
    %v1642 = vpop.f32.mrf.mxu0
    %v1643 = vadd.f32 %v1301, %v1642
    %v1644 = vpop.f32.mrf.mxu0
    %1645 = vmatprep.mubr.bf16.mxu0 %v1520
    %1646 = vmatmul.mubr.bf16.gmra.mxu0 %v1519
    %v1647 = vpop.f32.mrf.mxu0
    %v1648 = vadd.f32 %v1306, %v1647
    %v1649 = vpop.f32.mrf.mxu0
    %v1650 = vpop.f32.mrf.mxu0
    %v1651 = vadd.f32 %v1311, %v1650
    %v1652 = vpop.f32.mrf.mxu0
    %1653 = vmatprep.mubr.bf16.mxu0 %v1522
    %1654 = vmatmul.mubr.bf16.gmra.mxu0 %v1521
    %v1655 = vpop.f32.mrf.mxu0
    %v1656 = vadd.f32 %v1316, %v1655
    %v1657 = vpop.f32.mrf.mxu0
    %v1658 = vpop.f32.mrf.mxu0
    %v1659 = vadd.f32 %v1321, %v1658
    %v1660 = vpop.f32.mrf.mxu0
    %1661 = vmatprep.mubr.bf16.mxu0 %v1524
    %1662 = vmatmul.mubr.bf16.gmra.mxu0 %v1523
    %v1663 = vpop.f32.mrf.mxu0
    %v1664 = vadd.f32 %v1326, %v1663
    %v1665 = vpop.f32.mrf.mxu0
    %v1666 = vpop.f32.mrf.mxu0
    %v1667 = vadd.f32 %v1331, %v1666
    %v1668 = vpop.f32.mrf.mxu0
    %1669 = vmatprep.mubr.bf16.mxu0 %v1526
    %1670 = vmatmul.mubr.bf16.gmra.mxu0 %v1525
    %v1671 = vpop.f32.mrf.mxu0
    %v1672 = vadd.f32 %v1336, %v1671
    %v1673 = vpop.f32.mrf.mxu0
    %v1674 = vpop.f32.mrf.mxu0
    %v1675 = vadd.f32 %v1341, %v1674
    %v1676 = vpop.f32.mrf.mxu0
    %1677 = vmatprep.mubr.bf16.mxu0 %v1528
    %1678 = vmatmul.mubr.bf16.gmra.mxu0 %v1527
    %v1679 = vpop.f32.mrf.mxu0
    %v1680 = vadd.f32 %v1346, %v1679
    %v1681 = vpop.f32.mrf.mxu0
    %v1682 = vpop.f32.mrf.mxu0
    %v1683 = vadd.f32 %v1351, %v1682
    %v1684 = vpop.f32.mrf.mxu0
    %1685 = vmatprep.mubr.bf16.mxu0 %v1530
    %1686 = vmatmul.mubr.bf16.gmra.mxu0 %v1529
    %v1687 = vpop.f32.mrf.mxu0
    %v1688 = vadd.f32 %v1356, %v1687
    %v1689 = vpop.f32.mrf.mxu0
    %v1690 = vpop.f32.mrf.mxu0
    %v1691 = vadd.f32 %v1361, %v1690
    %v1692 = vpop.f32.mrf.mxu0
    %1693 = vmatprep.mubr.bf16.mxu0 %v1532
    %1694 = vmatmul.mubr.bf16.gmra.mxu0 %v1531
    %v1695 = vpop.f32.mrf.mxu0
    %v1696 = vadd.f32 %v1366, %v1695
    %v1697 = vpop.f32.mrf.mxu0
    %v1698 = vpop.f32.mrf.mxu0
    %v1699 = vadd.f32 %v1371, %v1698
    %v1700 = vpop.f32.mrf.mxu0
    %1701 = vmatprep.mubr.bf16.mxu0 %v1534
    %1702 = vmatmul.mubr.bf16.gmra.mxu0 %v1533
    %v1703 = vpop.f32.mrf.mxu0
    %v1704 = vadd.f32 %v1376, %v1703
    %v1705 = vpop.f32.mrf.mxu0
    %v1706 = vpop.f32.mrf.mxu0
    %v1707 = vadd.f32 %v1381, %v1706
    %v1708 = vpop.f32.mrf.mxu0
    %1709 = vmatprep.mubr.bf16.mxu0 %v1536
    %1710 = vmatmul.mubr.bf16.gmra.mxu0 %v1535
    %v1711 = vpop.f32.mrf.mxu0
    %v1712 = vadd.f32 %v1386, %v1711
    %v1713 = vpop.f32.mrf.mxu0
    %v1714 = vpop.f32.mrf.mxu0
    %v1715 = vadd.f32 %v1391, %v1714
    %v1716 = vpop.f32.mrf.mxu0
    %1717 = vmatprep.mubr.bf16.mxu0 %v1538
    %1718 = vmatmul.mubr.bf16.gmra.mxu0 %v1537
    %v1719 = vpop.f32.mrf.mxu0
    %v1720 = vadd.f32 %v1396, %v1719
    %v1721 = vpop.f32.mrf.mxu0
    %v1722 = vpop.f32.mrf.mxu0
    %v1723 = vadd.f32 %v1401, %v1722
    %v1724 = vpop.f32.mrf.mxu0
    %1725 = vmatprep.mubr.bf16.mxu0 %v1540
    %1726 = vmatmul.mubr.bf16.gmra.mxu0 %v1539
    %v1727 = vpop.f32.mrf.mxu0
    %v1728 = vadd.f32 %v1406, %v1727
    %v1729 = vpop.f32.mrf.mxu0
    %v1730 = vpop.f32.mrf.mxu0
    %v1731 = vadd.f32 %v1411, %v1730
    %v1732 = vpop.f32.mrf.mxu0
    %1733 = vdwg.mxu0
    %v1734 = vpack.c.bf16 %v1611, %v1608
    %v1735 = vpack.c.bf16 %v1619, %v1616
    %v1736 = vpack.c.bf16 %v1627, %v1624
    %v1737 = vpack.c.bf16 %v1635, %v1632
    %v1738 = vpack.c.bf16 %v1643, %v1640
    %v1739 = vpack.c.bf16 %v1651, %v1648
    %v1740 = vpack.c.bf16 %v1659, %v1656
    %v1741 = vpack.c.bf16 %v1667, %v1664
    %v1742 = vpack.c.bf16 %v1675, %v1672
    %v1743 = vpack.c.bf16 %v1683, %v1680
    %v1744 = vpack.c.bf16 %v1691, %v1688
    %v1745 = vpack.c.bf16 %v1699, %v1696
    %v1746 = vpack.c.bf16 %v1707, %v1704
    %v1747 = vpack.c.bf16 %v1715, %v1712
    %v1748 = vpack.c.bf16 %v1723, %v1720
    %v1749 = vpack.c.bf16 %v1731, %v1728
    %v1750 = vtanh.bf16.pop %v1734
    %v1751 = vtanh.bf16.pop %v1735
    %v1752 = vtanh.bf16.pop %v1736
    %v1753 = vtanh.bf16.pop %v1737
    %v1754 = vtanh.bf16.pop %v1738
    %v1755 = vtanh.bf16.pop %v1739
    %v1756 = vtanh.bf16.pop %v1740
    %v1757 = vtanh.bf16.pop %v1741
    %v1758 = vtanh.bf16.pop %v1742
    %v1759 = vtanh.bf16.pop %v1743
    %v1760 = vtanh.bf16.pop %v1744
    %v1761 = vtanh.bf16.pop %v1745
    %v1762 = vtanh.bf16.pop %v1746
    %v1763 = vtanh.bf16.pop %v1747
    %v1764 = vtanh.bf16.pop %v1748
    %v1765 = vtanh.bf16.pop %v1749
    %v1766 = vld [vmem:[%s7] sm:$0xff]
    %v1767 = vld [vmem:[%s8] sm:$0xff]
    %1769 = vset.pattern.permute.xlu0 0
    %1770 = vperm.xlu0 %1769, %v1767
    %v1771 = vpop.permute.xlu0 %1770
    %v1774 = vunpack.c.l.b16 %v1766
    %v1775 = vunpack.c.h.b16 %v1766
    %v1776 = vpack.c.b16 %v1774, %v1774
    %v1777 = vpack.c.b16 %v1775, %v1775
    %1780 = vmatprep.subr.bf16.mxu0 0
    %1781 = vmatpush1.bf16.msra.mxu0 %v1757
    %1782 = vmatprep.subr.bf16.mxu0 0
    %1783 = vmatpush1.bf16.msra.mxu0 %v1756
    %1784 = vmatprep.subr.bf16.mxu0 0
    %1785 = vmatpush1.bf16.msra.mxu0 %v1755
    %1786 = vmatprep.subr.bf16.mxu0 0
    %1787 = vmatpush1.bf16.msra.mxu0 %v1754
    %1788 = vmatprep.subr.bf16.mxu0 0
    %1789 = vmatpush1.bf16.msra.mxu0 %v1753
    %1790 = vmatprep.subr.bf16.mxu0 0
    %1791 = vmatpush1.bf16.msra.mxu0 %v1752
    %1792 = vmatprep.subr.bf16.mxu0 0
    %1793 = vmatpush1.bf16.msra.mxu0 %v1751
    %1794 = vmatprep.subr.bf16.mxu0 0
    %1795 = vmatpush1.bf16.msra.mxu0 %v1750
    %1796 = vmatprep.subr.bf16.mxu0 0
    %1797 = vmatpush2.bf16.msra.mxu0 %v1765
    %1798 = vmatprep.subr.bf16.mxu0 0
    %1799 = vmatpush2.bf16.msra.mxu0 %v1764
    %1800 = vmatprep.subr.bf16.mxu0 0
    %1801 = vmatpush2.bf16.msra.mxu0 %v1763
    %1802 = vmatprep.subr.bf16.mxu0 0
    %1803 = vmatpush2.bf16.msra.mxu0 %v1762
    %1804 = vmatprep.subr.bf16.mxu0 0
    %1805 = vmatpush2.bf16.msra.mxu0 %v1761
    %1806 = vmatprep.subr.bf16.mxu0 0
    %1807 = vmatpush2.bf16.msra.mxu0 %v1760
    %1808 = vmatprep.subr.bf16.mxu0 0
    %1809 = vmatpush2.bf16.msra.mxu0 %v1759
    %1810 = vmatprep.subr.bf16.mxu0 0
    %1811 = vmatpush2.bf16.msra.mxu0 %v1758
    %1812 = vmatprep.mubr.bf16.mxu0 %v1777
    %1813 = vmatmul.mubr.bf16.gmra.mxu0 %v1776
    %v1814 = vpop.f32.mrf.mxu0
    %v1815 = vadd.f32 %v1771, %v1814
    %v1816 = vpop.f32.mrf.mxu0
    %v1817 = vpop.f32.mrf.mxu0
    %v1818 = vpop.f32.mrf.mxu0
    %1819 = vdwg.mxu0
    %1820 = vst [vmem:[#allocation2] sm:$0xff] %v1815
    // Predicated region
    $region38: #{tpu_custom_call.1} parent=1 // pred_check
      _
    $region39: #{tpu_custom_call.1} parent=1 // pred_check_branch
      %1822 = sbr.rel (0) target = $region41
    $region40: #{tpu_custom_call.1} parent=1 // pred_region
      %s1824 = ssub.s32 128, 128
      %1825 = vsyncadd [#allocation3], %s1824
      %s1827 = sshll.u32 [#allocation2], 4
      %s1828 = int_to_ptr.vmem [resolvable:$true] %s1827
      %1830 = dma.vmem_to_hbm [thread:$0]  %s1828, 128, %s9, [#allocation3]
    $region41: #{tpu_custom_call.1} parent=1 // pred_fallthru
      _
    // Predicated region
    $region42: #{tpu_custom_call.1} parent=1 // pred_check
      _
    $region43: #{tpu_custom_call.1} parent=1 // pred_check_branch
      %1832 = sbr.rel (0) target = $region45
    $region44: #{tpu_custom_call.1} parent=1 // pred_region
      %1833 = dma.done [#allocation3], 128
    $region45: #{tpu_custom_call.1} parent=1 // pred_fallthru
      _
    %1834 = vsyncpa [#allocation3], 1

</llo_original>
